<compile_context>
chip_gen: v6e
topology: v6e:2x2x1
jax: 0.10.0
libtpu: 0.0.40
codegen_flags: <defaults>
</compile_context>

<pallas_src>
from functools import partial

import jax
import jax.numpy as jnp
from jax.experimental import pallas as pl
from jax.experimental.pallas import tpu as pltpu


# ---------------- fused Pallas kernel (one batch image per grid step) ----------------

def _carry_fire_kernel(x_ref, ws_ref, wc_ref, mask_ref, o_ref, spad_ref,
                       *, width, filter_size):
    """Fused CarryModular(SimpleFire) forward for one image (flattened NHWC rows).

    x_ref:    (M, Cin)          input rows, M = H*W, channels-last
    ws_ref:   (Cin, Cs)         SimpleFire.Shrink 1x1 weights (no activation)
    wc_ref:   (fs*fs*Cs, G)     combined [Block3x3 | Block1x1] weights (tap-major)
    mask_ref: (M, fs)           col kw: 1.0 where horizontal tap offset (kw - fs//2)
                                stays inside the image row (kills W wrap-around)
    o_ref:    (M, Cout)         output slab [Block3x3 | Block1x1 | carry(x)]
    spad_ref: (M + (fs-1)*(width+1), Cs)  VMEM scratch: zero-padded shrink rows
    """
    m = x_ref.shape[0]
    p = filter_size // 2

    x = x_ref[...]
    # SimpleFire.Shrink: 1x1 conv == channel matmul, activation=None.
    s = jnp.dot(x, ws_ref[...], preferred_element_type=jnp.float32)

    # Keep the shrink output in VMEM, zero-padded in the flattened row space:
    # p*(width+1) zero rows above/below give the 'SAME' halo for the KxK taps
    # (no HBM round trip of the intermediate, no jnp.pad/im2col in plain XLA).
    spad_ref[...] = jnp.zeros_like(spad_ref)
    spad_ref[pl.ds(p * (width + 1), m), :] = s

    # In-kernel im2col: tap (kh, kw) of the KxK window is the M-row slice of the
    # padded buffer starting at kh*width + kw (static offsets).  Horizontal
    # wrap-around across image rows is zeroed by the per-column edge masks.
    taps = []
    for kh in range(filter_size):
        for kw in range(filter_size):
            t = spad_ref[pl.ds(kh * width + kw, m), :]
            if kw != p:
                t = t * mask_ref[:, kw:kw + 1]
            taps.append(t)
    patches = jnp.concatenate(taps, axis=-1)              # (M, fs*fs*Cs)

    # ONE matmul (K = fs*fs*Cs) computes BOTH fire branches: the Block1x1
    # weights are folded into the centre-tap rows of wc_ref.
    fire = jnp.maximum(
        jnp.dot(patches, wc_ref[...], preferred_element_type=jnp.float32), 0.0)

    # Single lane-dense store of the whole CarryModular output slab.
    # strides=1  =>  the carry branch is the identity (input channels appended).
    o_ref[...] = jnp.concatenate([fire, x], axis=-1).astype(o_ref.dtype)


# ---------------- wrapper (NCHW boundary, one fused pallas_call) ----------------

def carry_modular_forward(x_nchw, params, filter_size=3):
    """CarryModular(strides=1, dropout=0, block=SimpleFire) forward, NCHW in/out."""
    w_shrink, w3, w1 = params
    n, c_in, h, w = x_nchw.shape
    c_s = w_shrink.shape[1]
    g3 = w3.shape[-1]
    g1 = w1.shape[-1]
    growth = g3 + g1
    c_out = growth + c_in
    m = h * w
    fs = filter_size
    p = fs // 2

    # TODO(synk): DropOut/DropBlock (p=0.0 => identity), the strides>1
    # AvgPool/MaxPool carry branch, and the in==out 'dynamic'/pre_network path
    # of CarryModular are not modeled in this strides=1 configuration.

    # NCHW -> NHWC -> flatten spatial: all kernel math is lane-major [M, C].
    x2 = jnp.transpose(x_nchw, (0, 2, 3, 1)).astype(jnp.float32).reshape(n, m, c_in)

    # Combined fire weights: columns [0:G3] = flattened KxK HWIO Block3x3
    # weights (tap-major rows); columns [G3:] = Block1x1 weights on the
    # centre-tap rows -> both branches share a single K = fs*fs*Cs matmul.
    w3_flat = w3.reshape(fs * fs * c_s, g3)
    centre = (p * fs + p) * c_s
    w1_full = jnp.zeros((fs * fs * c_s, g1), jnp.float32)
    w1_full = w1_full.at[centre:centre + c_s, :].set(w1)
    w_comb = jnp.concatenate([w3_flat, w1_full], axis=-1)      # (fs*fs*Cs, growth)

    # Horizontal-edge validity masks for the flattened-row im2col (built once).
    col = jnp.arange(m, dtype=jnp.int32) % w
    mask = jnp.stack(
        [((col + (kw - p) >= 0) & (col + (kw - p) < w)) for kw in range(fs)],
        axis=-1).astype(jnp.float32)                           # (M, fs)

    kernel = partial(_carry_fire_kernel, width=w, filter_size=fs)
    out = pl.pallas_call(
        kernel,
        out_shape=jax.ShapeDtypeStruct((n, m, c_out), jnp.float32),
        grid=(n,),
        in_specs=[
            pl.BlockSpec((None, m, c_in), lambda b: (b, 0, 0)),
            pl.BlockSpec((c_in, c_s), lambda b: (0, 0)),
            pl.BlockSpec((fs * fs * c_s, growth), lambda b: (0, 0)),
            pl.BlockSpec((m, fs), lambda b: (0, 0)),
        ],
        out_specs=pl.BlockSpec((None, m, c_out), lambda b: (b, 0, 0)),
        scratch_shapes=[pltpu.VMEM((m + (fs - 1) * (w + 1), c_s), jnp.float32)],
        compiler_params=pltpu.CompilerParams(
            dimension_semantics=("parallel",),
            vmem_limit_bytes=32 * 1024 * 1024),
    )(x2, w_shrink, w_comb, mask)

    return jnp.transpose(out.reshape(n, h, w, c_out), (0, 3, 1, 2))


# ---------------- pure-JAX reference ----------------

def carry_modular_reference(x_nchw, params):
    w_shrink, w3, w1 = params
    x = jnp.transpose(x_nchw, (0, 2, 3, 1)).astype(jnp.float32)
    s = jnp.einsum('nhwc,cd->nhwd', x, w_shrink)               # Shrink (no act)
    b3 = jax.nn.relu(jax.lax.conv_general_dilated(
        s, w3, window_strides=(1, 1), padding='SAME',
        dimension_numbers=('NHWC', 'HWIO', 'NHWC')))
    b1 = jax.nn.relu(jnp.einsum('nhwc,cd->nhwd', s, w1))
    out = jnp.concatenate([b3, b1, x], axis=-1)                # cat(fire, carry)
    return jnp.transpose(out, (0, 3, 1, 2))


# ---------------- deterministic param init ----------------

def init_carry_modular_params(key, in_channels, out_channels, filter_size=3):
    growth = out_channels - in_channels          # CarryModular: in < out branch
    c_s = growth // 4                            # SimpleFire.Shrink channels
    g3 = growth // 2                             # SimpleFire.Block3x3 channels
    g1 = growth - g3                             # SimpleFire.Block1x1 channels
    k1, k2, k3 = jax.random.split(key, 3)
    w_shrink = (jax.random.normal(k1, (in_channels, c_s), jnp.float32)
                / jnp.sqrt(in_channels))
    w3 = (jax.random.normal(k2, (filter_size, filter_size, c_s, g3), jnp.float32)
          / jnp.sqrt(c_s * filter_size * filter_size))
    w1 = jax.random.normal(k3, (c_s, g1), jnp.float32) / jnp.sqrt(c_s)
    return w_shrink, w3, w1


if __name__ == "__main__":
    # CarryModular config: tensor_size=(2, 32, 16, 16) NCHW, filter_size=3,
    # out_channels=64, strides=1 -> growth_rate = 64 - 32 = 32;
    # SimpleFire: Shrink 8 ch, Block3x3 16 ch, Block1x1 16 ch.
    N, C_IN, H, W = 2, 32, 16, 16
    OUT_CHANNELS = 64

    key = jax.random.PRNGKey(0)
    kx, kp = jax.random.split(key)
    x = jax.random.normal(kx, (N, C_IN, H, W), jnp.float32)
    params = init_carry_modular_params(kp, C_IN, OUT_CHANNELS)

    out = carry_modular_forward(x, params)
    out = jax.block_until_ready(out)
    assert out.shape == (N, OUT_CHANNELS, H, W), out.shape

    ref = carry_modular_reference(x, params)
    max_err = float(jnp.max(jnp.abs(out - ref)))
    assert jnp.allclose(out, ref, atol=1e-3, rtol=1e-3), max_err

    print("KERNEL_OK")
</pallas_src>

<mosaic_0001>
module attributes {stable_mosaic.version = 11 : i64} {
  func.func @_carry_fire_kernel(%arg0: i32, %arg1: memref<1x256x32xf32, #tpu.memory_space<vmem>>, %arg2: memref<32x8xf32, #tpu.memory_space<vmem>>, %arg3: memref<72x32xf32, #tpu.memory_space<vmem>>, %arg4: memref<256x3xf32, #tpu.memory_space<vmem>>, %arg5: memref<1x256x64xf32, #tpu.memory_space<vmem>>, %arg6: memref<290x8xf32, #tpu.memory_space<vmem>>) attributes {dimension_semantics = [#tpu.dimension_semantics<parallel>], iteration_bounds = array<i64: 2>, scalar_prefetch = 0 : i64, scratch_operands = 1 : i64, tpu.core_type = #tpu.core_type<tc>, window_params = [{transform_indices = @transform_0, window_bounds = array<i64: 1, 256, 32>}, {pipeline_mode = #tpu.pipeline_mode<synchronous>, transform_indices = @transform_1, window_bounds = array<i64: 32, 8>}, {pipeline_mode = #tpu.pipeline_mode<synchronous>, transform_indices = @transform_2, window_bounds = array<i64: 72, 32>}, {pipeline_mode = #tpu.pipeline_mode<synchronous>, transform_indices = @transform_3, window_bounds = array<i64: 256, 3>}, {transform_indices = @transform_4, window_bounds = array<i64: 1, 256, 64>}]} {
    %c0 = arith.constant 0 : index
    %c0_0 = arith.constant 0 : index
    %c0_1 = arith.constant 0 : index
    %0 = vector.load %arg1[%c0, %c0_0, %c0_1] : memref<1x256x32xf32, #tpu.memory_space<vmem>>, vector<1x256x32xf32>
    %1 = vector.shape_cast %0 : vector<1x256x32xf32> to vector<256x32xf32>
    %c0_2 = arith.constant 0 : index
    %c0_3 = arith.constant 0 : index
    %2 = vector.load %arg2[%c0_2, %c0_3] : memref<32x8xf32, #tpu.memory_space<vmem>>, vector<32x8xf32>
    %cst = arith.constant dense<0.000000e+00> : vector<256x8xf32>
    %3 = tpu.matmul %1, %2, %cst {dimension_numbers = #tpu.dot_dimension_numbers<[1], [0], [0], [1], [0, 0, 1, 1], [], []>} : vector<256x32xf32>, vector<32x8xf32>, vector<256x8xf32> -> vector<256x8xf32>
    %cst_4 = arith.constant 0.000000e+00 : f32
    %4 = vector.broadcast %cst_4 : f32 to vector<290x8xf32>
    %c0_5 = arith.constant 0 : index
    %c0_6 = arith.constant 0 : index
    %5 = vector.load %arg6[%c0_5, %c0_6] : memref<290x8xf32, #tpu.memory_space<vmem>>, vector<290x8xf32>
    tpu.vector_store %arg6[%c0_5, %c0_6], %4 {strides = array<i32>} : memref<290x8xf32, #tpu.memory_space<vmem>>, vector<290x8xf32>,
    %c17 = arith.constant 17 : index
    %c0_7 = arith.constant 0 : index
    %6 = vector.load %arg6[%c17, %c0_7] : memref<290x8xf32, #tpu.memory_space<vmem>>, vector<256x8xf32>
    tpu.vector_store %arg6[%c17, %c0_7], %3 {strides = array<i32>} : memref<290x8xf32, #tpu.memory_space<vmem>>, vector<256x8xf32>,
    %c0_8 = arith.constant 0 : index
    %c0_9 = arith.constant 0 : index
    %7 = vector.load %arg6[%c0_8, %c0_9] : memref<290x8xf32, #tpu.memory_space<vmem>>, vector<256x8xf32>
    %c0_10 = arith.constant 0 : index
    %c0_11 = arith.constant 0 : index
    %8 = vector.load %arg4[%c0_10, %c0_11] : memref<256x3xf32, #tpu.memory_space<vmem>>, vector<256x1xf32>
    %9 = vector.broadcast %8 : vector<256x1xf32> to vector<256x8xf32>
    %10 = arith.mulf %7, %9 : vector<256x8xf32>
    %c1 = arith.constant 1 : index
    %c0_12 = arith.constant 0 : index
    %11 = vector.load %arg6[%c1, %c0_12] : memref<290x8xf32, #tpu.memory_space<vmem>>, vector<256x8xf32>
    %c2 = arith.constant 2 : index
    %c0_13 = arith.constant 0 : index
    %12 = vector.load %arg6[%c2, %c0_13] : memref<290x8xf32, #tpu.memory_space<vmem>>, vector<256x8xf32>
    %c0_14 = arith.constant 0 : index
    %c2_15 = arith.constant 2 : index
    %13 = vector.load %arg4[%c0_14, %c2_15] : memref<256x3xf32, #tpu.memory_space<vmem>>, vector<256x1xf32>
    %14 = vector.broadcast %13 : vector<256x1xf32> to vector<256x8xf32>
    %15 = arith.mulf %12, %14 : vector<256x8xf32>
    %c16 = arith.constant 16 : index
    %c0_16 = arith.constant 0 : index
    %16 = vector.load %arg6[%c16, %c0_16] : memref<290x8xf32, #tpu.memory_space<vmem>>, vector<256x8xf32>
    %c0_17 = arith.constant 0 : index
    %c0_18 = arith.constant 0 : index
    %17 = vector.load %arg4[%c0_17, %c0_18] : memref<256x3xf32, #tpu.memory_space<vmem>>, vector<256x1xf32>
    %18 = vector.broadcast %17 : vector<256x1xf32> to vector<256x8xf32>
    %19 = arith.mulf %16, %18 : vector<256x8xf32>
    %c17_19 = arith.constant 17 : index
    %c0_20 = arith.constant 0 : index
    %20 = vector.load %arg6[%c17_19, %c0_20] : memref<290x8xf32, #tpu.memory_space<vmem>>, vector<256x8xf32>
    %c18 = arith.constant 18 : index
    %c0_21 = arith.constant 0 : index
    %21 = vector.load %arg6[%c18, %c0_21] : memref<290x8xf32, #tpu.memory_space<vmem>>, vector<256x8xf32>
    %c0_22 = arith.constant 0 : index
    %c2_23 = arith.constant 2 : index
    %22 = vector.load %arg4[%c0_22, %c2_23] : memref<256x3xf32, #tpu.memory_space<vmem>>, vector<256x1xf32>
    %23 = vector.broadcast %22 : vector<256x1xf32> to vector<256x8xf32>
    %24 = arith.mulf %21, %23 : vector<256x8xf32>
    %c32 = arith.constant 32 : index
    %c0_24 = arith.constant 0 : index
    %25 = vector.load %arg6[%c32, %c0_24] : memref<290x8xf32, #tpu.memory_space<vmem>>, vector<256x8xf32>
    %c0_25 = arith.constant 0 : index
    %c0_26 = arith.constant 0 : index
    %26 = vector.load %arg4[%c0_25, %c0_26] : memref<256x3xf32, #tpu.memory_space<vmem>>, vector<256x1xf32>
    %27 = vector.broadcast %26 : vector<256x1xf32> to vector<256x8xf32>
    %28 = arith.mulf %25, %27 : vector<256x8xf32>
    %c33 = arith.constant 33 : index
    %c0_27 = arith.constant 0 : index
    %29 = vector.load %arg6[%c33, %c0_27] : memref<290x8xf32, #tpu.memory_space<vmem>>, vector<256x8xf32>
    %c34 = arith.constant 34 : index
    %c0_28 = arith.constant 0 : index
    %30 = vector.load %arg6[%c34, %c0_28] : memref<290x8xf32, #tpu.memory_space<vmem>>, vector<256x8xf32>
    %c0_29 = arith.constant 0 : index
    %c2_30 = arith.constant 2 : index
    %31 = vector.load %arg4[%c0_29, %c2_30] : memref<256x3xf32, #tpu.memory_space<vmem>>, vector<256x1xf32>
    %32 = vector.broadcast %31 : vector<256x1xf32> to vector<256x8xf32>
    %33 = arith.mulf %30, %32 : vector<256x8xf32>
    %34 = tpu.concatenate %10, %11, %15, %19, %20, %24, %28, %29, %33 in 1 : vector<256x8xf32>, vector<256x8xf32>, vector<256x8xf32>, vector<256x8xf32>, vector<256x8xf32>, vector<256x8xf32>, vector<256x8xf32>, vector<256x8xf32>, vector<256x8xf32> -> vector<256x72xf32>
    %c0_31 = arith.constant 0 : index
    %c0_32 = arith.constant 0 : index
    %35 = vector.load %arg3[%c0_31, %c0_32] : memref<72x32xf32, #tpu.memory_space<vmem>>, vector<72x32xf32>
    %cst_33 = arith.constant dense<0.000000e+00> : vector<256x32xf32>
    %36 = tpu.matmul %34, %35, %cst_33 {dimension_numbers = #tpu.dot_dimension_numbers<[1], [0], [0], [1], [0, 0, 1, 1], [], []>} : vector<256x72xf32>, vector<72x32xf32>, vector<256x32xf32> -> vector<256x32xf32>
    %cst_34 = arith.constant 0.000000e+00 : f32
    %37 = vector.broadcast %cst_34 : f32 to vector<256x32xf32>
    %38 = arith.maximumf %36, %37 : vector<256x32xf32>
    %39 = tpu.concatenate %38, %1 in 1 : vector<256x32xf32>, vector<256x32xf32> -> vector<256x64xf32>
    %c0_35 = arith.constant 0 : index
    %c0_36 = arith.constant 0 : index
    %c0_37 = arith.constant 0 : index
    %40 = vector.load %arg5[%c0_35, %c0_36, %c0_37] : memref<1x256x64xf32, #tpu.memory_space<vmem>>, vector<1x256x64xf32>
    %41 = vector.shape_cast %40 : vector<1x256x64xf32> to vector<256x64xf32>
    %42 = vector.shape_cast %39 : vector<256x64xf32> to vector<1x256x64xf32>
    tpu.vector_store %arg5[%c0_35, %c0_36, %c0_37], %42 {strides = array<i32>} : memref<1x256x64xf32, #tpu.memory_space<vmem>>, vector<1x256x64xf32>,
    return
  }
  func.func @transform_0(%arg0: i32) -> (i32, i32, i32) {
    %c0_i32 = arith.constant 0 : i32
    %c0_i32_0 = arith.constant 0 : i32
    %c0_i32_1 = arith.constant 0 : i32
    return %arg0, %c0_i32, %c0_i32_0 : i32, i32, i32
  }
  func.func @transform_1(%arg0: i32) -> (i32, i32) {
    %c0_i32 = arith.constant 0 : i32
    %c0_i32_0 = arith.constant 0 : i32
    %c0_i32_1 = arith.constant 0 : i32
    return %c0_i32, %c0_i32_0 : i32, i32
  }
  func.func @transform_2(%arg0: i32) -> (i32, i32) {
    %c0_i32 = arith.constant 0 : i32
    %c0_i32_0 = arith.constant 0 : i32
    %c0_i32_1 = arith.constant 0 : i32
    return %c0_i32, %c0_i32_0 : i32, i32
  }
  func.func @transform_3(%arg0: i32) -> (i32, i32) {
    %c0_i32 = arith.constant 0 : i32
    %c0_i32_0 = arith.constant 0 : i32
    %c0_i32_1 = arith.constant 0 : i32
    return %c0_i32, %c0_i32_0 : i32, i32
  }
  func.func @transform_4(%arg0: i32) -> (i32, i32, i32) {
    %c0_i32 = arith.constant 0 : i32
    %c0_i32_0 = arith.constant 0 : i32
    %c0_i32_1 = arith.constant 0 : i32
    return %arg0, %c0_i32, %c0_i32_0 : i32, i32, i32
  }
}

</mosaic_0001>

<llo_original>
// kernel: tpu_custom_call.1
$region0: #{tpu_custom_call.1}
  #allocation0 [shape = 'u32[]', space=smem, size = 0x4, offset = 0x4, fixed_abs, tag = 'smem constant byte address 0x4 - core index']
  #allocation1 [shape = 'u32[144,128]{1,0:T(1,128)}', space=vmem, size = 0x12000, scoped, tag = 'internal scratch']
  #allocation2 [shape = 'f32[290,8]{1,0:T(8,128)}', space=vmem, size = 0x25000, scoped, tag = 'scratch operand']
  %s0 = inlined_call_operand.vmem [shape: f32[2,256,32], index: 0, kind: input, shape index: {}]
  %s1 = inlined_call_operand.vmem [shape: f32[32,8], index: 1, kind: input, shape index: {}]
  %s2 = inlined_call_operand.vmem [shape: f32[72,32], index: 2, kind: input, shape index: {}]
  %s3 = inlined_call_operand.vmem [shape: f32[256,3], index: 3, kind: input, shape index: {}]
  %s4 = inlined_call_operand.vmem [shape: f32[2,256,64], index: 4, kind: output, shape index: {}]
  %s5 = sld [smem:[#allocation0]]
  $region49: #{tpu_custom_call.1} parent=0
    _
  %s7 = ssub.s32 1, %s5
  %s8 = scalar_select 0, %s7, %s5
  loop: start=0, step=1, limit=4
  $region2: #{tpu_custom_call.1} parent=0 // loop_pre_header
    _
  $region3: #{tpu_custom_call.1} parent=0 // loop_header
    %s10 = sphi 0, %s14
    %p11 = scmp.ge.s32.totalorder %s10, 4
    %s20 = sphi 0, %s22
    %s23 = sphi 0, %s20
    %s24 = sphi 0, %s23
    %s40 = sphi 0, %s24
    %s44 = sphi 0, %s44
    %s46 = sphi 0, %s44
    %s47 = sphi 0, %s46
    %s61 = sphi 0, %s47
    %s65 = sphi 0, %s65
    %s67 = sphi 0, %s65
    %s68 = sphi 0, %s67
    %s82 = sphi 0, %s68
    %s86 = sphi 0, %s86
    %s88 = sphi 0, %s86
    %s89 = sphi 0, %s88
    %s103 = sphi 0, %s89
    %s109 = sphi 0, %s111
    %s112 = sphi 0, %s109
    %s113 = sphi 0, %s112
    %s129 = sphi 0, %s113
  $region4: #{tpu_custom_call.1} parent=0 // loop_header_branch
    %13 = sbr.rel (%p11) target = $region8
  $region5: #{tpu_custom_call.1} parent=0 // loop_body
    %s15 = ssub.s32 %s10, 1
    %s16 = ssub.s32 %s10, 2
    %s17 = sadd.s32 %s10, 1
    %s18 = ssub.s32 %s10, %s17
    %p19 = scmp.eq.s32.totalorder %s18, 0
    %s21 = sadd.s32 %s20, 1
    %s22 = scalar_select %p19, %s20, %s21
    %p25 = pneg %p19
    %p26 = scmp.eq.s32.totalorder %s10, 1
    %p27 = por %p25, %p26
    %p28 = scmp.ne.s32.totalorder %s20, %s23
    %p29 = scmp.eq.s32.totalorder %s10, 0
    %p30 = por %p28, %p29
    %p31 = scmp.ne.s32.totalorder %s20, %s23
    %p32 = scmp.eq.s32.totalorder %s15, 1
    %p33 = por %p31, %p32
    %p34 = scmp.ne.s32.totalorder %s23, %s24
    %p35 = scmp.eq.s32.totalorder %s15, 0
    %p36 = por %p34, %p35
    %p37 = scmp.ne.s32.totalorder %s23, %s24
    %p38 = scmp.eq.s32.totalorder %s16, 1
    %p39 = por %p37, %p38
    %p41 = scmp.ne.s32.totalorder %s24, %s40
    %p42 = scmp.eq.s32.totalorder %s16, 0
    %p43 = por %p41, %p42
    %s45 = sadd.s32 %s44, 1
    %p48 = scmp.eq.s32.totalorder %s10, 1
    %p49 = scmp.ne.s32.totalorder %s44, %s46
    %p50 = scmp.eq.s32.totalorder %s10, 0
    %p51 = por %p49, %p50
    %p52 = scmp.ne.s32.totalorder %s44, %s46
    %p53 = scmp.eq.s32.totalorder %s15, 1
    %p54 = por %p52, %p53
    %p55 = scmp.ne.s32.totalorder %s46, %s47
    %p56 = scmp.eq.s32.totalorder %s15, 0
    %p57 = por %p55, %p56
    %p58 = scmp.ne.s32.totalorder %s46, %s47
    %p59 = scmp.eq.s32.totalorder %s16, 1
    %p60 = por %p58, %p59
    %p62 = scmp.ne.s32.totalorder %s47, %s61
    %p63 = scmp.eq.s32.totalorder %s16, 0
    %p64 = por %p62, %p63
    %s66 = sadd.s32 %s65, 1
    %p69 = scmp.eq.s32.totalorder %s10, 1
    %p70 = scmp.ne.s32.totalorder %s65, %s67
    %p71 = scmp.eq.s32.totalorder %s10, 0
    %p72 = por %p70, %p71
    %p73 = scmp.ne.s32.totalorder %s65, %s67
    %p74 = scmp.eq.s32.totalorder %s15, 1
    %p75 = por %p73, %p74
    %p76 = scmp.ne.s32.totalorder %s67, %s68
    %p77 = scmp.eq.s32.totalorder %s15, 0
    %p78 = por %p76, %p77
    %p79 = scmp.ne.s32.totalorder %s67, %s68
    %p80 = scmp.eq.s32.totalorder %s16, 1
    %p81 = por %p79, %p80
    %p83 = scmp.ne.s32.totalorder %s68, %s82
    %p84 = scmp.eq.s32.totalorder %s16, 0
    %p85 = por %p83, %p84
    %s87 = sadd.s32 %s86, 1
    %p90 = scmp.eq.s32.totalorder %s10, 1
    %p91 = scmp.ne.s32.totalorder %s86, %s88
    %p92 = scmp.eq.s32.totalorder %s10, 0
    %p93 = por %p91, %p92
    %p94 = scmp.ne.s32.totalorder %s86, %s88
    %p95 = scmp.eq.s32.totalorder %s15, 1
    %p96 = por %p94, %p95
    %p97 = scmp.ne.s32.totalorder %s88, %s89
    %p98 = scmp.eq.s32.totalorder %s15, 0
    %p99 = por %p97, %p98
    %p100 = scmp.ne.s32.totalorder %s88, %s89
    %p101 = scmp.eq.s32.totalorder %s16, 1
    %p102 = por %p100, %p101
    %p104 = scmp.ne.s32.totalorder %s89, %s103
    %p105 = scmp.eq.s32.totalorder %s16, 0
    %p106 = por %p104, %p105
    %s107 = ssub.s32 %s10, %s17
    %p108 = scmp.eq.s32.totalorder %s107, 0
    %s110 = sadd.s32 %s109, 1
    %s111 = scalar_select %p108, %s109, %s110
    %p114 = pneg %p108
    %p115 = scmp.eq.s32.totalorder %s10, 1
    %p116 = por %p114, %p115
    %p117 = scmp.ne.s32.totalorder %s109, %s112
    %p118 = scmp.eq.s32.totalorder %s10, 0
    %p119 = por %p117, %p118
    %p120 = scmp.ne.s32.totalorder %s109, %s112
    %p121 = scmp.eq.s32.totalorder %s15, 1
    %p122 = por %p120, %p121
    %p123 = scmp.ne.s32.totalorder %s112, %s113
    %p124 = scmp.eq.s32.totalorder %s15, 0
    %p125 = por %p123, %p124
    %p126 = scmp.ne.s32.totalorder %s112, %s113
    %p127 = scmp.eq.s32.totalorder %s16, 1
    %p128 = por %p126, %p127
    %p130 = scmp.ne.s32.totalorder %s113, %s129
    %p131 = scmp.eq.s32.totalorder %s16, 0
    %p132 = por %p130, %p131
    %p133 = scmp.le.s32.totalorder 1, %s10
    %p134 = scmp.lt.s32.totalorder %s10, 3
    %p135 = pnand %p133, %p134
    %p136 = pneg %p135
    // Predicated region
    $region9: #{tpu_custom_call.1} parent=5 // pred_check
      _
    $region10: #{tpu_custom_call.1} parent=5 // pred_check_branch
      %138 = sbr.rel (%p135) target = $region12
    $region11: #{tpu_custom_call.1} parent=5 // pred_region
      %s139 = ssub.s32 %s10, 1
      // Predicated region
      $region13: #{tpu_custom_call.1} parent=11 // pred_check
        %p140 = pneg %p57
      $region14: #{tpu_custom_call.1} parent=11 // pred_check_branch
        %142 = sbr.rel (%p140) target = $region16
      $region15: #{tpu_custom_call.1} parent=11 // pred_region
        _
      $region16: #{tpu_custom_call.1} parent=11 // pred_fallthru
        _
      // Predicated region
      $region17: #{tpu_custom_call.1} parent=11 // pred_check
        %p143 = pneg %p78
      $region18: #{tpu_custom_call.1} parent=11 // pred_check_branch
        %145 = sbr.rel (%p143) target = $region20
      $region19: #{tpu_custom_call.1} parent=11 // pred_region
        _
      $region20: #{tpu_custom_call.1} parent=11 // pred_fallthru
        _
      // Predicated region
      $region21: #{tpu_custom_call.1} parent=11 // pred_check
        %p146 = pneg %p99
      $region22: #{tpu_custom_call.1} parent=11 // pred_check_branch
        %148 = sbr.rel (%p146) target = $region24
      $region23: #{tpu_custom_call.1} parent=11 // pred_region
        _
      $region24: #{tpu_custom_call.1} parent=11 // pred_fallthru
        _
    $region12: #{tpu_custom_call.1} parent=5 // pred_fallthru
      _
    %p149 = scmp.lt.s32.totalorder %s10, 2
    // Predicated region
    $region25: #{tpu_custom_call.1} parent=5 // pred_check
      %p150 = pneg %p149
    $region26: #{tpu_custom_call.1} parent=5 // pred_check_branch
      %152 = sbr.rel (%p150) target = $region28
    $region27: #{tpu_custom_call.1} parent=5 // pred_region
      // Predicated region
      $region29: #{tpu_custom_call.1} parent=27 // pred_check
        %p153 = pneg %p30
      $region30: #{tpu_custom_call.1} parent=27 // pred_check_branch
        %155 = sbr.rel (%p153) target = $region32
      $region31: #{tpu_custom_call.1} parent=27 // pred_region
        %p156 = scmp.lt.s32.totalorder %s10, 1
        %s157 = scalar_select %p156, %s10, 1
        %s158 = smul.addr %s157, 32
        %s159 = smul.addr %s158, 8
        %s160 = scalar_lea.vmem %s0, %s159
      $region32: #{tpu_custom_call.1} parent=27 // pred_fallthru
        _
    $region28: #{tpu_custom_call.1} parent=5 // pred_fallthru
      _
    %p161 = scmp.le.s32.totalorder 1, %s10
    %p162 = scmp.lt.s32.totalorder %s10, 3
    %p163 = pnand %p161, %p162
    %p164 = pneg %p163
    // Predicated region
    $region33: #{tpu_custom_call.1} parent=5 // pred_check
      _
    $region34: #{tpu_custom_call.1} parent=5 // pred_check_branch
      %166 = sbr.rel (%p163) target = $region36
    $region35: #{tpu_custom_call.1} parent=5 // pred_region
      %s167 = ssub.s32 %s10, 1
      %p168 = scmp.lt.s32.totalorder %s15, 1
      %s169 = scalar_select %p168, %s15, 1
      %s170 = smul.addr %s169, 32
      %s171 = smul.addr %s170, 8
      %s172 = scalar_lea.vmem %s0, %s171
      %p173 = pneg %p36
      %p174 = pneg %p33
      %p175 = pneg %p57
      %p176 = pneg %p54
      %p177 = pneg %p78
      %p178 = pneg %p75
      %p179 = pneg %p99
      %p180 = pneg %p96
      %p181 = pneg %p125
      %p182 = pneg %p122
      %p183 = scmp.lt.s32.totalorder %s15, 1
      %s184 = scalar_select %p183, %s15, 1
      %s185 = smul.addr %s184, 32
      %s186 = smul.addr %s185, 8
      %s187 = scalar_lea.vmem %s4, %s186
      %p188 = scmp.lt.s32.totalorder %s15, 1
      %s189 = scalar_select %p188, %s15, 1
      %s190 = smul.addr %s189, 32
      %s191 = smul.addr %s190, 8
      %s192 = scalar_lea.vmem %s0, %s191
      %p193 = scmp.lt.s32.totalorder %s15, 1
      %s194 = scalar_select %p193, %s15, 1
      %s195 = smul.addr %s194, 32
      %s196 = smul.addr %s195, 8
      %s197 = scalar_lea.vmem %s4, %s196
      %v198 = vld [vmem:[%s192] sm:$0xff]
      %v199 = vld [vmem:[%s192 + $0x8] sm:$0xff]
      %v200 = vld [vmem:[%s192 + $0x10] sm:$0xff]
      %v201 = vld [vmem:[%s192 + $0x18] sm:$0xff]
      %v202 = vld [vmem:[%s192 + $0x20] sm:$0xff]
      %v203 = vld [vmem:[%s192 + $0x28] sm:$0xff]
      %v204 = vld [vmem:[%s192 + $0x30] sm:$0xff]
      %v205 = vld [vmem:[%s192 + $0x38] sm:$0xff]
      %v206 = vld [vmem:[%s192 + $0x40] sm:$0xff]
      %v207 = vld [vmem:[%s192 + $0x48] sm:$0xff]
      %v208 = vld [vmem:[%s192 + $0x50] sm:$0xff]
      %v209 = vld [vmem:[%s192 + $0x58] sm:$0xff]
      %v210 = vld [vmem:[%s192 + $0x60] sm:$0xff]
      %v211 = vld [vmem:[%s192 + $0x68] sm:$0xff]
      %v212 = vld [vmem:[%s192 + $0x70] sm:$0xff]
      %v213 = vld [vmem:[%s192 + $0x78] sm:$0xff]
      %v214 = vld [vmem:[%s192 + $0x80] sm:$0xff]
      %v215 = vld [vmem:[%s192 + $0x88] sm:$0xff]
      %v216 = vld [vmem:[%s192 + $0x90] sm:$0xff]
      %v217 = vld [vmem:[%s192 + $0x98] sm:$0xff]
      %v218 = vld [vmem:[%s192 + $0xa0] sm:$0xff]
      %v219 = vld [vmem:[%s192 + $0xa8] sm:$0xff]
      %v220 = vld [vmem:[%s192 + $0xb0] sm:$0xff]
      %v221 = vld [vmem:[%s192 + $0xb8] sm:$0xff]
      %v222 = vld [vmem:[%s192 + $0xc0] sm:$0xff]
      %v223 = vld [vmem:[%s192 + $0xc8] sm:$0xff]
      %v224 = vld [vmem:[%s192 + $0xd0] sm:$0xff]
      %v225 = vld [vmem:[%s192 + $0xd8] sm:$0xff]
      %v226 = vld [vmem:[%s192 + $0xe0] sm:$0xff]
      %v227 = vld [vmem:[%s192 + $0xe8] sm:$0xff]
      %v228 = vld [vmem:[%s192 + $0xf0] sm:$0xff]
      %v229 = vld [vmem:[%s192 + $0xf8] sm:$0xff]
      %v230 = vld [vmem:[%s1] sm:$0xff]
      %v231 = vld [vmem:[%s1 + $0x8] sm:$0xff]
      %v232 = vld [vmem:[%s1 + $0x10] sm:$0xff]
      %v233 = vld [vmem:[%s1 + $0x18] sm:$0xff]
      %vm234 = vcmask 261120
      %v236 = vsel %vm234, %v198, 0
      %v239 = vsel %vm234, %v199, 0
      %v242 = vsel %vm234, %v200, 0
      %v245 = vsel %vm234, %v201, 0
      %v248 = vsel %vm234, %v202, 0
      %v251 = vsel %vm234, %v203, 0
      %v254 = vsel %vm234, %v204, 0
      %v257 = vsel %vm234, %v205, 0
      %v260 = vsel %vm234, %v206, 0
      %v263 = vsel %vm234, %v207, 0
      %v266 = vsel %vm234, %v208, 0
      %v269 = vsel %vm234, %v209, 0
      %v272 = vsel %vm234, %v210, 0
      %v275 = vsel %vm234, %v211, 0
      %v278 = vsel %vm234, %v212, 0
      %v281 = vsel %vm234, %v213, 0
      %v284 = vsel %vm234, %v214, 0
      %v287 = vsel %vm234, %v215, 0
      %v290 = vsel %vm234, %v216, 0
      %v293 = vsel %vm234, %v217, 0
      %v296 = vsel %vm234, %v218, 0
      %v299 = vsel %vm234, %v219, 0
      %v302 = vsel %vm234, %v220, 0
      %v305 = vsel %vm234, %v221, 0
      %v308 = vsel %vm234, %v222, 0
      %v311 = vsel %vm234, %v223, 0
      %v314 = vsel %vm234, %v224, 0
      %v317 = vsel %vm234, %v225, 0
      %v320 = vsel %vm234, %v226, 0
      %v323 = vsel %vm234, %v227, 0
      %v326 = vsel %vm234, %v228, 0
      %v329 = vsel %vm234, %v229, 0
      %331 = vmatprep.subr.mxu0 0.0
      %332 = vmatpush1.msra.mxu0 0.0
      %333 = vmatprep.subr.mxu0 0.0
      %334 = vmatpush1.msra.mxu0 0.0
      %335 = vmatprep.subr.mxu0 0.0
      %336 = vmatpush1.msra.mxu0 0.0
      %337 = vmatprep.subr.mxu0 0.0
      %338 = vmatpush1.msra.mxu0 0.0
      %339 = vmatprep.subr.mxu0 0.0
      %340 = vmatpush1.msra.mxu0 0.0
      %341 = vmatprep.subr.mxu0 0.0
      %342 = vmatpush1.msra.mxu0 0.0
      %343 = vmatprep.subr.mxu0 0.0
      %344 = vmatpush1.msra.mxu0 0.0
      %345 = vmatprep.subr.mxu0 0.0
      %346 = vmatpush1.msra.mxu0 0.0
      %347 = vmatprep.subr.mxu0 0.0
      %348 = vmatpush1.msra.mxu0 0.0
      %349 = vmatprep.subr.mxu0 0.0
      %350 = vmatpush1.msra.mxu0 0.0
      %351 = vmatprep.subr.mxu0 0.0
      %352 = vmatpush1.msra.mxu0 0.0
      %353 = vmatprep.subr.mxu0 0.0
      %354 = vmatpush1.msra.mxu0 0.0
      %355 = vmatprep.subr.mxu0 0.0
      %356 = vmatpush1.msra.mxu0 %v233
      %357 = vmatprep.subr.mxu0 0.0
      %358 = vmatpush1.msra.mxu0 %v232
      %359 = vmatprep.subr.mxu0 0.0
      %360 = vmatpush1.msra.mxu0 %v231
      %361 = vmatprep.subr.mxu0 0.0
      %362 = vmatpush1.msra.mxu0 %v230
      %363 = vmatprep.subr.mxu0 0.0
      %364 = vmatpush2.msra.mxu0 0.0
      %365 = vmatprep.subr.mxu0 0.0
      %366 = vmatpush2.msra.mxu0 0.0
      %367 = vmatprep.subr.mxu0 0.0
      %368 = vmatpush2.msra.mxu0 0.0
      %369 = vmatprep.subr.mxu0 0.0
      %370 = vmatpush2.msra.mxu0 0.0
      %371 = vmatprep.subr.mxu0 0.0
      %372 = vmatpush2.msra.mxu0 0.0
      %373 = vmatprep.subr.mxu0 0.0
      %374 = vmatpush2.msra.mxu0 0.0
      %375 = vmatprep.subr.mxu0 0.0
      %376 = vmatpush2.msra.mxu0 0.0
      %377 = vmatprep.subr.mxu0 0.0
      %378 = vmatpush2.msra.mxu0 0.0
      %379 = vmatprep.subr.mxu0 0.0
      %380 = vmatpush2.msra.mxu0 0.0
      %381 = vmatprep.subr.mxu0 0.0
      %382 = vmatpush2.msra.mxu0 0.0
      %383 = vmatprep.subr.mxu0 0.0
      %384 = vmatpush2.msra.mxu0 0.0
      %385 = vmatprep.subr.mxu0 0.0
      %386 = vmatpush2.msra.mxu0 0.0
      %387 = vmatprep.subr.mxu0 0.0
      %388 = vmatpush2.msra.mxu0 0.0
      %389 = vmatprep.subr.mxu0 0.0
      %390 = vmatpush2.msra.mxu0 0.0
      %391 = vmatprep.subr.mxu0 0.0
      %392 = vmatpush2.msra.mxu0 0.0
      %393 = vmatprep.subr.mxu0 0.0
      %394 = vmatpush2.msra.mxu0 0.0
      %395 = vmatprep.mubr.f32.mxu0 0.0
      %396 = vmatmul.mubr.f32.gmra.mxu0 %v236
      %v397 = vpop.f32.mrf.mxu0
      %v398 = vadd.f32 0.0, %v397
      %v399 = vpop.f32.mrf.mxu0
      %400 = vmatprep.mubr.f32.mxu0 0.0
      %401 = vmatmul.mubr.f32.gmra.mxu0 %v239
      %v402 = vpop.f32.mrf.mxu0
      %v403 = vadd.f32 0.0, %v402
      %v404 = vpop.f32.mrf.mxu0
      %405 = vmatprep.mubr.f32.mxu0 0.0
      %406 = vmatmul.mubr.f32.gmra.mxu0 %v242
      %v407 = vpop.f32.mrf.mxu0
      %v408 = vadd.f32 0.0, %v407
      %v409 = vpop.f32.mrf.mxu0
      %410 = vmatprep.mubr.f32.mxu0 0.0
      %411 = vmatmul.mubr.f32.gmra.mxu0 %v245
      %v412 = vpop.f32.mrf.mxu0
      %v413 = vadd.f32 0.0, %v412
      %v414 = vpop.f32.mrf.mxu0
      %415 = vmatprep.mubr.f32.mxu0 0.0
      %416 = vmatmul.mubr.f32.gmra.mxu0 %v248
      %v417 = vpop.f32.mrf.mxu0
      %v418 = vadd.f32 0.0, %v417
      %v419 = vpop.f32.mrf.mxu0
      %420 = vmatprep.mubr.f32.mxu0 0.0
      %421 = vmatmul.mubr.f32.gmra.mxu0 %v251
      %v422 = vpop.f32.mrf.mxu0
      %v423 = vadd.f32 0.0, %v422
      %v424 = vpop.f32.mrf.mxu0
      %425 = vmatprep.mubr.f32.mxu0 0.0
      %426 = vmatmul.mubr.f32.gmra.mxu0 %v254
      %v427 = vpop.f32.mrf.mxu0
      %v428 = vadd.f32 0.0, %v427
      %v429 = vpop.f32.mrf.mxu0
      %430 = vmatprep.mubr.f32.mxu0 0.0
      %431 = vmatmul.mubr.f32.gmra.mxu0 %v257
      %v432 = vpop.f32.mrf.mxu0
      %v433 = vadd.f32 0.0, %v432
      %v434 = vpop.f32.mrf.mxu0
      %435 = vmatprep.mubr.f32.mxu0 0.0
      %436 = vmatmul.mubr.f32.gmra.mxu0 %v260
      %v437 = vpop.f32.mrf.mxu0
      %v438 = vadd.f32 0.0, %v437
      %v439 = vpop.f32.mrf.mxu0
      %440 = vmatprep.mubr.f32.mxu0 0.0
      %441 = vmatmul.mubr.f32.gmra.mxu0 %v263
      %v442 = vpop.f32.mrf.mxu0
      %v443 = vadd.f32 0.0, %v442
      %v444 = vpop.f32.mrf.mxu0
      %445 = vmatprep.mubr.f32.mxu0 0.0
      %446 = vmatmul.mubr.f32.gmra.mxu0 %v266
      %v447 = vpop.f32.mrf.mxu0
      %v448 = vadd.f32 0.0, %v447
      %v449 = vpop.f32.mrf.mxu0
      %450 = vmatprep.mubr.f32.mxu0 0.0
      %451 = vmatmul.mubr.f32.gmra.mxu0 %v269
      %v452 = vpop.f32.mrf.mxu0
      %v453 = vadd.f32 0.0, %v452
      %v454 = vpop.f32.mrf.mxu0
      %455 = vmatprep.mubr.f32.mxu0 0.0
      %456 = vmatmul.mubr.f32.gmra.mxu0 %v272
      %v457 = vpop.f32.mrf.mxu0
      %v458 = vadd.f32 0.0, %v457
      %v459 = vpop.f32.mrf.mxu0
      %460 = vmatprep.mubr.f32.mxu0 0.0
      %461 = vmatmul.mubr.f32.gmra.mxu0 %v275
      %v462 = vpop.f32.mrf.mxu0
      %v463 = vadd.f32 0.0, %v462
      %v464 = vpop.f32.mrf.mxu0
      %465 = vmatprep.mubr.f32.mxu0 0.0
      %466 = vmatmul.mubr.f32.gmra.mxu0 %v278
      %v467 = vpop.f32.mrf.mxu0
      %v468 = vadd.f32 0.0, %v467
      %v469 = vpop.f32.mrf.mxu0
      %470 = vmatprep.mubr.f32.mxu0 0.0
      %471 = vmatmul.mubr.f32.gmra.mxu0 %v281
      %v472 = vpop.f32.mrf.mxu0
      %v473 = vadd.f32 0.0, %v472
      %v474 = vpop.f32.mrf.mxu0
      %475 = vmatprep.mubr.f32.mxu0 0.0
      %476 = vmatmul.mubr.f32.gmra.mxu0 %v284
      %v477 = vpop.f32.mrf.mxu0
      %v478 = vadd.f32 0.0, %v477
      %v479 = vpop.f32.mrf.mxu0
      %480 = vmatprep.mubr.f32.mxu0 0.0
      %481 = vmatmul.mubr.f32.gmra.mxu0 %v287
      %v482 = vpop.f32.mrf.mxu0
      %v483 = vadd.f32 0.0, %v482
      %v484 = vpop.f32.mrf.mxu0
      %485 = vmatprep.mubr.f32.mxu0 0.0
      %486 = vmatmul.mubr.f32.gmra.mxu0 %v290
      %v487 = vpop.f32.mrf.mxu0
      %v488 = vadd.f32 0.0, %v487
      %v489 = vpop.f32.mrf.mxu0
      %490 = vmatprep.mubr.f32.mxu0 0.0
      %491 = vmatmul.mubr.f32.gmra.mxu0 %v293
      %v492 = vpop.f32.mrf.mxu0
      %v493 = vadd.f32 0.0, %v492
      %v494 = vpop.f32.mrf.mxu0
      %495 = vmatprep.mubr.f32.mxu0 0.0
      %496 = vmatmul.mubr.f32.gmra.mxu0 %v296
      %v497 = vpop.f32.mrf.mxu0
      %v498 = vadd.f32 0.0, %v497
      %v499 = vpop.f32.mrf.mxu0
      %500 = vmatprep.mubr.f32.mxu0 0.0
      %501 = vmatmul.mubr.f32.gmra.mxu0 %v299
      %v502 = vpop.f32.mrf.mxu0
      %v503 = vadd.f32 0.0, %v502
      %v504 = vpop.f32.mrf.mxu0
      %505 = vmatprep.mubr.f32.mxu0 0.0
      %506 = vmatmul.mubr.f32.gmra.mxu0 %v302
      %v507 = vpop.f32.mrf.mxu0
      %v508 = vadd.f32 0.0, %v507
      %v509 = vpop.f32.mrf.mxu0
      %510 = vmatprep.mubr.f32.mxu0 0.0
      %511 = vmatmul.mubr.f32.gmra.mxu0 %v305
      %v512 = vpop.f32.mrf.mxu0
      %v513 = vadd.f32 0.0, %v512
      %v514 = vpop.f32.mrf.mxu0
      %515 = vmatprep.mubr.f32.mxu0 0.0
      %516 = vmatmul.mubr.f32.gmra.mxu0 %v308
      %v517 = vpop.f32.mrf.mxu0
      %v518 = vadd.f32 0.0, %v517
      %v519 = vpop.f32.mrf.mxu0
      %520 = vmatprep.mubr.f32.mxu0 0.0
      %521 = vmatmul.mubr.f32.gmra.mxu0 %v311
      %v522 = vpop.f32.mrf.mxu0
      %v523 = vadd.f32 0.0, %v522
      %v524 = vpop.f32.mrf.mxu0
      %525 = vmatprep.mubr.f32.mxu0 0.0
      %526 = vmatmul.mubr.f32.gmra.mxu0 %v314
      %v527 = vpop.f32.mrf.mxu0
      %v528 = vadd.f32 0.0, %v527
      %v529 = vpop.f32.mrf.mxu0
      %530 = vmatprep.mubr.f32.mxu0 0.0
      %531 = vmatmul.mubr.f32.gmra.mxu0 %v317
      %v532 = vpop.f32.mrf.mxu0
      %v533 = vadd.f32 0.0, %v532
      %v534 = vpop.f32.mrf.mxu0
      %535 = vmatprep.mubr.f32.mxu0 0.0
      %536 = vmatmul.mubr.f32.gmra.mxu0 %v320
      %v537 = vpop.f32.mrf.mxu0
      %v538 = vadd.f32 0.0, %v537
      %v539 = vpop.f32.mrf.mxu0
      %540 = vmatprep.mubr.f32.mxu0 0.0
      %541 = vmatmul.mubr.f32.gmra.mxu0 %v323
      %v542 = vpop.f32.mrf.mxu0
      %v543 = vadd.f32 0.0, %v542
      %v544 = vpop.f32.mrf.mxu0
      %545 = vmatprep.mubr.f32.mxu0 0.0
      %546 = vmatmul.mubr.f32.gmra.mxu0 %v326
      %v547 = vpop.f32.mrf.mxu0
      %v548 = vadd.f32 0.0, %v547
      %v549 = vpop.f32.mrf.mxu0
      %550 = vmatprep.mubr.f32.mxu0 0.0
      %551 = vmatmul.mubr.f32.gmra.mxu0 %v329
      %v552 = vpop.f32.mrf.mxu0
      %v553 = vadd.f32 0.0, %v552
      %v554 = vpop.f32.mrf.mxu0
      %555 = vdwg.mxu0
      %vm556 = vcmask 64512
      %557 = vst.msk [vmem:[#allocation2] sm:$0xff] %vm556, 0.0
      %558 = vst.msk [vmem:[#allocation2 + $0x8] sm:$0xff] %vm556, 0.0
      %559 = vst.msk [vmem:[#allocation2 + $0x10] sm:$0xff] %vm556, 0.0
      %560 = vst.msk [vmem:[#allocation2 + $0x18] sm:$0xff] %vm556, 0.0
      %561 = vst.msk [vmem:[#allocation2 + $0x20] sm:$0xff] %vm556, 0.0
      %562 = vst.msk [vmem:[#allocation2 + $0x28] sm:$0xff] %vm556, 0.0
      %563 = vst.msk [vmem:[#allocation2 + $0x30] sm:$0xff] %vm556, 0.0
      %564 = vst.msk [vmem:[#allocation2 + $0x38] sm:$0xff] %vm556, 0.0
      %565 = vst.msk [vmem:[#allocation2 + $0x40] sm:$0xff] %vm556, 0.0
      %566 = vst.msk [vmem:[#allocation2 + $0x48] sm:$0xff] %vm556, 0.0
      %567 = vst.msk [vmem:[#allocation2 + $0x50] sm:$0xff] %vm556, 0.0
      %568 = vst.msk [vmem:[#allocation2 + $0x58] sm:$0xff] %vm556, 0.0
      %569 = vst.msk [vmem:[#allocation2 + $0x60] sm:$0xff] %vm556, 0.0
      %570 = vst.msk [vmem:[#allocation2 + $0x68] sm:$0xff] %vm556, 0.0
      %571 = vst.msk [vmem:[#allocation2 + $0x70] sm:$0xff] %vm556, 0.0
      %572 = vst.msk [vmem:[#allocation2 + $0x78] sm:$0xff] %vm556, 0.0
      %573 = vst.msk [vmem:[#allocation2 + $0x80] sm:$0xff] %vm556, 0.0
      %574 = vst.msk [vmem:[#allocation2 + $0x88] sm:$0xff] %vm556, 0.0
      %575 = vst.msk [vmem:[#allocation2 + $0x90] sm:$0xff] %vm556, 0.0
      %576 = vst.msk [vmem:[#allocation2 + $0x98] sm:$0xff] %vm556, 0.0
      %577 = vst.msk [vmem:[#allocation2 + $0xa0] sm:$0xff] %vm556, 0.0
      %578 = vst.msk [vmem:[#allocation2 + $0xa8] sm:$0xff] %vm556, 0.0
      %579 = vst.msk [vmem:[#allocation2 + $0xb0] sm:$0xff] %vm556, 0.0
      %580 = vst.msk [vmem:[#allocation2 + $0xb8] sm:$0xff] %vm556, 0.0
      %581 = vst.msk [vmem:[#allocation2 + $0xc0] sm:$0xff] %vm556, 0.0
      %582 = vst.msk [vmem:[#allocation2 + $0xc8] sm:$0xff] %vm556, 0.0
      %583 = vst.msk [vmem:[#allocation2 + $0xd0] sm:$0xff] %vm556, 0.0
      %584 = vst.msk [vmem:[#allocation2 + $0xd8] sm:$0xff] %vm556, 0.0
      %585 = vst.msk [vmem:[#allocation2 + $0xe0] sm:$0xff] %vm556, 0.0
      %586 = vst.msk [vmem:[#allocation2 + $0xe8] sm:$0xff] %vm556, 0.0
      %587 = vst.msk [vmem:[#allocation2 + $0xf0] sm:$0xff] %vm556, 0.0
      %588 = vst.msk [vmem:[#allocation2 + $0xf8] sm:$0xff] %vm556, 0.0
      %589 = vst.msk [vmem:[#allocation2 + $0x100] sm:$0xff] %vm556, 0.0
      %590 = vst.msk [vmem:[#allocation2 + $0x108] sm:$0xff] %vm556, 0.0
      %591 = vst.msk [vmem:[#allocation2 + $0x110] sm:$0xff] %vm556, 0.0
      %592 = vst.msk [vmem:[#allocation2 + $0x118] sm:$0xff] %vm556, 0.0
      %vm593 = vcmask 58368
      %594 = vst.msk [vmem:[#allocation2 + $0x120] sm:$0x3] %vm593, 0.0
      %595 = vst.msk [vmem:[#allocation2 + $0x11] sm:$0xff] %vm556, %v398
      %596 = vst.msk [vmem:[#allocation2 + $0x19] sm:$0xff] %vm556, %v403
      %597 = vst.msk [vmem:[#allocation2 + $0x21] sm:$0xff] %vm556, %v408
      %598 = vst.msk [vmem:[#allocation2 + $0x29] sm:$0xff] %vm556, %v413
      %599 = vst.msk [vmem:[#allocation2 + $0x31] sm:$0xff] %vm556, %v418
      %600 = vst.msk [vmem:[#allocation2 + $0x39] sm:$0xff] %vm556, %v423
      %601 = vst.msk [vmem:[#allocation2 + $0x41] sm:$0xff] %vm556, %v428
      %602 = vst.msk [vmem:[#allocation2 + $0x49] sm:$0xff] %vm556, %v433
      %603 = vst.msk [vmem:[#allocation2 + $0x51] sm:$0xff] %vm556, %v438
      %604 = vst.msk [vmem:[#allocation2 + $0x59] sm:$0xff] %vm556, %v443
      %605 = vst.msk [vmem:[#allocation2 + $0x61] sm:$0xff] %vm556, %v448
      %606 = vst.msk [vmem:[#allocation2 + $0x69] sm:$0xff] %vm556, %v453
      %607 = vst.msk [vmem:[#allocation2 + $0x71] sm:$0xff] %vm556, %v458
      %608 = vst.msk [vmem:[#allocation2 + $0x79] sm:$0xff] %vm556, %v463
      %609 = vst.msk [vmem:[#allocation2 + $0x81] sm:$0xff] %vm556, %v468
      %610 = vst.msk [vmem:[#allocation2 + $0x89] sm:$0xff] %vm556, %v473
      %611 = vst.msk [vmem:[#allocation2 + $0x91] sm:$0xff] %vm556, %v478
      %612 = vst.msk [vmem:[#allocation2 + $0x99] sm:$0xff] %vm556, %v483
      %613 = vst.msk [vmem:[#allocation2 + $0xa1] sm:$0xff] %vm556, %v488
      %614 = vst.msk [vmem:[#allocation2 + $0xa9] sm:$0xff] %vm556, %v493
      %615 = vst.msk [vmem:[#allocation2 + $0xb1] sm:$0xff] %vm556, %v498
      %616 = vst.msk [vmem:[#allocation2 + $0xb9] sm:$0xff] %vm556, %v503
      %617 = vst.msk [vmem:[#allocation2 + $0xc1] sm:$0xff] %vm556, %v508
      %618 = vst.msk [vmem:[#allocation2 + $0xc9] sm:$0xff] %vm556, %v513
      %619 = vst.msk [vmem:[#allocation2 + $0xd1] sm:$0xff] %vm556, %v518
      %620 = vst.msk [vmem:[#allocation2 + $0xd9] sm:$0xff] %vm556, %v523
      %621 = vst.msk [vmem:[#allocation2 + $0xe1] sm:$0xff] %vm556, %v528
      %622 = vst.msk [vmem:[#allocation2 + $0xe9] sm:$0xff] %vm556, %v533
      %623 = vst.msk [vmem:[#allocation2 + $0xf1] sm:$0xff] %vm556, %v538
      %624 = vst.msk [vmem:[#allocation2 + $0xf9] sm:$0xff] %vm556, %v543
      %625 = vst.msk [vmem:[#allocation2 + $0x101] sm:$0xff] %vm556, %v548
      %626 = vst.msk [vmem:[#allocation2 + $0x109] sm:$0xff] %vm556, %v553
      %v627 = vld [vmem:[#allocation2] sm:$0xff]
      %v628 = vld [vmem:[#allocation2 + $0x8] sm:$0xff]
      %v629 = vld [vmem:[#allocation2 + $0x10] sm:$0xff]
      %v630 = vld [vmem:[#allocation2 + $0x18] sm:$0xff]
      %v631 = vld [vmem:[#allocation2 + $0x20] sm:$0xff]
      %v632 = vld [vmem:[#allocation2 + $0x28] sm:$0xff]
      %v633 = vld [vmem:[#allocation2 + $0x30] sm:$0xff]
      %v634 = vld [vmem:[#allocation2 + $0x38] sm:$0xff]
      %v635 = vld [vmem:[#allocation2 + $0x40] sm:$0xff]
      %v636 = vld [vmem:[#allocation2 + $0x48] sm:$0xff]
      %v637 = vld [vmem:[#allocation2 + $0x50] sm:$0xff]
      %v638 = vld [vmem:[#allocation2 + $0x58] sm:$0xff]
      %v639 = vld [vmem:[#allocation2 + $0x60] sm:$0xff]
      %v640 = vld [vmem:[#allocation2 + $0x68] sm:$0xff]
      %v641 = vld [vmem:[#allocation2 + $0x70] sm:$0xff]
      %v642 = vld [vmem:[#allocation2 + $0x78] sm:$0xff]
      %v643 = vld [vmem:[#allocation2 + $0x80] sm:$0xff]
      %v644 = vld [vmem:[#allocation2 + $0x88] sm:$0xff]
      %v645 = vld [vmem:[#allocation2 + $0x90] sm:$0xff]
      %v646 = vld [vmem:[#allocation2 + $0x98] sm:$0xff]
      %v647 = vld [vmem:[#allocation2 + $0xa0] sm:$0xff]
      %v648 = vld [vmem:[#allocation2 + $0xa8] sm:$0xff]
      %v649 = vld [vmem:[#allocation2 + $0xb0] sm:$0xff]
      %v650 = vld [vmem:[#allocation2 + $0xb8] sm:$0xff]
      %v651 = vld [vmem:[#allocation2 + $0xc0] sm:$0xff]
      %v652 = vld [vmem:[#allocation2 + $0xc8] sm:$0xff]
      %v653 = vld [vmem:[#allocation2 + $0xd0] sm:$0xff]
      %v654 = vld [vmem:[#allocation2 + $0xd8] sm:$0xff]
      %v655 = vld [vmem:[#allocation2 + $0xe0] sm:$0xff]
      %v656 = vld [vmem:[#allocation2 + $0xe8] sm:$0xff]
      %v657 = vld [vmem:[#allocation2 + $0xf0] sm:$0xff]
      %v658 = vld [vmem:[#allocation2 + $0xf8] sm:$0xff]
      %v659 = vld [vmem:[%s3] sm:$0xff]
      %v660 = vld [vmem:[%s3 + $0x8] sm:$0xff]
      %v661 = vld [vmem:[%s3 + $0x10] sm:$0xff]
      %v662 = vld [vmem:[%s3 + $0x18] sm:$0xff]
      %v663 = vld [vmem:[%s3 + $0x20] sm:$0xff]
      %v664 = vld [vmem:[%s3 + $0x28] sm:$0xff]
      %v665 = vld [vmem:[%s3 + $0x30] sm:$0xff]
      %v666 = vld [vmem:[%s3 + $0x38] sm:$0xff]
      %v667 = vld [vmem:[%s3 + $0x40] sm:$0xff]
      %v668 = vld [vmem:[%s3 + $0x48] sm:$0xff]
      %v669 = vld [vmem:[%s3 + $0x50] sm:$0xff]
      %v670 = vld [vmem:[%s3 + $0x58] sm:$0xff]
      %v671 = vld [vmem:[%s3 + $0x60] sm:$0xff]
      %v672 = vld [vmem:[%s3 + $0x68] sm:$0xff]
      %v673 = vld [vmem:[%s3 + $0x70] sm:$0xff]
      %v674 = vld [vmem:[%s3 + $0x78] sm:$0xff]
      %v675 = vld [vmem:[%s3 + $0x80] sm:$0xff]
      %v676 = vld [vmem:[%s3 + $0x88] sm:$0xff]
      %v677 = vld [vmem:[%s3 + $0x90] sm:$0xff]
      %v678 = vld [vmem:[%s3 + $0x98] sm:$0xff]
      %v679 = vld [vmem:[%s3 + $0xa0] sm:$0xff]
      %v680 = vld [vmem:[%s3 + $0xa8] sm:$0xff]
      %v681 = vld [vmem:[%s3 + $0xb0] sm:$0xff]
      %v682 = vld [vmem:[%s3 + $0xb8] sm:$0xff]
      %v683 = vld [vmem:[%s3 + $0xc0] sm:$0xff]
      %v684 = vld [vmem:[%s3 + $0xc8] sm:$0xff]
      %v685 = vld [vmem:[%s3 + $0xd0] sm:$0xff]
      %v686 = vld [vmem:[%s3 + $0xd8] sm:$0xff]
      %v687 = vld [vmem:[%s3 + $0xe0] sm:$0xff]
      %v688 = vld [vmem:[%s3 + $0xe8] sm:$0xff]
      %v689 = vld [vmem:[%s3 + $0xf0] sm:$0xff]
      %v690 = vld [vmem:[%s3 + $0xf8] sm:$0xff]
      %692 = vset.pattern.permute.xlu0 0
      %693 = vperm.xlu0 %692, %v659
      %v694 = vpop.permute.xlu0 %693
      %697 = vset.pattern.permute.xlu0 0
      %698 = vperm.xlu0 %697, %v660
      %v699 = vpop.permute.xlu0 %698
      %702 = vset.pattern.permute.xlu0 0
      %703 = vperm.xlu0 %702, %v661
      %v704 = vpop.permute.xlu0 %703
      %707 = vset.pattern.permute.xlu0 0
      %708 = vperm.xlu0 %707, %v662
      %v709 = vpop.permute.xlu0 %708
      %712 = vset.pattern.permute.xlu0 0
      %713 = vperm.xlu0 %712, %v663
      %v714 = vpop.permute.xlu0 %713
      %717 = vset.pattern.permute.xlu0 0
      %718 = vperm.xlu0 %717, %v664
      %v719 = vpop.permute.xlu0 %718
      %722 = vset.pattern.permute.xlu0 0
      %723 = vperm.xlu0 %722, %v665
      %v724 = vpop.permute.xlu0 %723
      %727 = vset.pattern.permute.xlu0 0
      %728 = vperm.xlu0 %727, %v666
      %v729 = vpop.permute.xlu0 %728
      %732 = vset.pattern.permute.xlu0 0
      %733 = vperm.xlu0 %732, %v667
      %v734 = vpop.permute.xlu0 %733
      %737 = vset.pattern.permute.xlu0 0
      %738 = vperm.xlu0 %737, %v668
      %v739 = vpop.permute.xlu0 %738
      %742 = vset.pattern.permute.xlu0 0
      %743 = vperm.xlu0 %742, %v669
      %v744 = vpop.permute.xlu0 %743
      %747 = vset.pattern.permute.xlu0 0
      %748 = vperm.xlu0 %747, %v670
      %v749 = vpop.permute.xlu0 %748
      %752 = vset.pattern.permute.xlu0 0
      %753 = vperm.xlu0 %752, %v671
      %v754 = vpop.permute.xlu0 %753
      %757 = vset.pattern.permute.xlu0 0
      %758 = vperm.xlu0 %757, %v672
      %v759 = vpop.permute.xlu0 %758
      %762 = vset.pattern.permute.xlu0 0
      %763 = vperm.xlu0 %762, %v673
      %v764 = vpop.permute.xlu0 %763
      %767 = vset.pattern.permute.xlu0 0
      %768 = vperm.xlu0 %767, %v674
      %v769 = vpop.permute.xlu0 %768
      %772 = vset.pattern.permute.xlu0 0
      %773 = vperm.xlu0 %772, %v675
      %v774 = vpop.permute.xlu0 %773
      %777 = vset.pattern.permute.xlu0 0
      %778 = vperm.xlu0 %777, %v676
      %v779 = vpop.permute.xlu0 %778
      %782 = vset.pattern.permute.xlu0 0
      %783 = vperm.xlu0 %782, %v677
      %v784 = vpop.permute.xlu0 %783
      %787 = vset.pattern.permute.xlu0 0
      %788 = vperm.xlu0 %787, %v678
      %v789 = vpop.permute.xlu0 %788
      %792 = vset.pattern.permute.xlu0 0
      %793 = vperm.xlu0 %792, %v679
      %v794 = vpop.permute.xlu0 %793
      %797 = vset.pattern.permute.xlu0 0
      %798 = vperm.xlu0 %797, %v680
      %v799 = vpop.permute.xlu0 %798
      %802 = vset.pattern.permute.xlu0 0
      %803 = vperm.xlu0 %802, %v681
      %v804 = vpop.permute.xlu0 %803
      %807 = vset.pattern.permute.xlu0 0
      %808 = vperm.xlu0 %807, %v682
      %v809 = vpop.permute.xlu0 %808
      %812 = vset.pattern.permute.xlu0 0
      %813 = vperm.xlu0 %812, %v683
      %v814 = vpop.permute.xlu0 %813
      %817 = vset.pattern.permute.xlu0 0
      %818 = vperm.xlu0 %817, %v684
      %v819 = vpop.permute.xlu0 %818
      %822 = vset.pattern.permute.xlu0 0
      %823 = vperm.xlu0 %822, %v685
      %v824 = vpop.permute.xlu0 %823
      %827 = vset.pattern.permute.xlu0 0
      %828 = vperm.xlu0 %827, %v686
      %v829 = vpop.permute.xlu0 %828
      %832 = vset.pattern.permute.xlu0 0
      %833 = vperm.xlu0 %832, %v687
      %v834 = vpop.permute.xlu0 %833
      %837 = vset.pattern.permute.xlu0 0
      %838 = vperm.xlu0 %837, %v688
      %v839 = vpop.permute.xlu0 %838
      %842 = vset.pattern.permute.xlu0 0
      %843 = vperm.xlu0 %842, %v689
      %v844 = vpop.permute.xlu0 %843
      %847 = vset.pattern.permute.xlu0 0
      %848 = vperm.xlu0 %847, %v690
      %v849 = vpop.permute.xlu0 %848
      %v851 = vmul.f32 %v627, %v694
      %v852 = vmul.f32 %v628, %v699
      %v853 = vmul.f32 %v629, %v704
      %v854 = vmul.f32 %v630, %v709
      %v855 = vmul.f32 %v631, %v714
      %v856 = vmul.f32 %v632, %v719
      %v857 = vmul.f32 %v633, %v724
      %v858 = vmul.f32 %v634, %v729
      %v859 = vmul.f32 %v635, %v734
      %v860 = vmul.f32 %v636, %v739
      %v861 = vmul.f32 %v637, %v744
      %v862 = vmul.f32 %v638, %v749
      %v863 = vmul.f32 %v639, %v754
      %v864 = vmul.f32 %v640, %v759
      %v865 = vmul.f32 %v641, %v764
      %v866 = vmul.f32 %v642, %v769
      %v867 = vmul.f32 %v643, %v774
      %v868 = vmul.f32 %v644, %v779
      %v869 = vmul.f32 %v645, %v784
      %v870 = vmul.f32 %v646, %v789
      %v871 = vmul.f32 %v647, %v794
      %v872 = vmul.f32 %v648, %v799
      %v873 = vmul.f32 %v649, %v804
      %v874 = vmul.f32 %v650, %v809
      %v875 = vmul.f32 %v651, %v814
      %v876 = vmul.f32 %v652, %v819
      %v877 = vmul.f32 %v653, %v824
      %v878 = vmul.f32 %v654, %v829
      %v879 = vmul.f32 %v655, %v834
      %v880 = vmul.f32 %v656, %v839
      %v881 = vmul.f32 %v657, %v844
      %v882 = vmul.f32 %v658, %v849
      %v883 = vld [vmem:[#allocation2 + $0x1] sm:$0xff]
      %v884 = vld [vmem:[#allocation2 + $0x9] sm:$0xff]
      %v885 = vld [vmem:[#allocation2 + $0x11] sm:$0xff]
      %v886 = vld [vmem:[#allocation2 + $0x19] sm:$0xff]
      %v887 = vld [vmem:[#allocation2 + $0x21] sm:$0xff]
      %v888 = vld [vmem:[#allocation2 + $0x29] sm:$0xff]
      %v889 = vld [vmem:[#allocation2 + $0x31] sm:$0xff]
      %v890 = vld [vmem:[#allocation2 + $0x39] sm:$0xff]
      %v891 = vld [vmem:[#allocation2 + $0x41] sm:$0xff]
      %v892 = vld [vmem:[#allocation2 + $0x49] sm:$0xff]
      %v893 = vld [vmem:[#allocation2 + $0x51] sm:$0xff]
      %v894 = vld [vmem:[#allocation2 + $0x59] sm:$0xff]
      %v895 = vld [vmem:[#allocation2 + $0x61] sm:$0xff]
      %v896 = vld [vmem:[#allocation2 + $0x69] sm:$0xff]
      %v897 = vld [vmem:[#allocation2 + $0x71] sm:$0xff]
      %v898 = vld [vmem:[#allocation2 + $0x79] sm:$0xff]
      %v899 = vld [vmem:[#allocation2 + $0x81] sm:$0xff]
      %v900 = vld [vmem:[#allocation2 + $0x89] sm:$0xff]
      %v901 = vld [vmem:[#allocation2 + $0x91] sm:$0xff]
      %v902 = vld [vmem:[#allocation2 + $0x99] sm:$0xff]
      %v903 = vld [vmem:[#allocation2 + $0xa1] sm:$0xff]
      %v904 = vld [vmem:[#allocation2 + $0xa9] sm:$0xff]
      %v905 = vld [vmem:[#allocation2 + $0xb1] sm:$0xff]
      %v906 = vld [vmem:[#allocation2 + $0xb9] sm:$0xff]
      %v907 = vld [vmem:[#allocation2 + $0xc1] sm:$0xff]
      %v908 = vld [vmem:[#allocation2 + $0xc9] sm:$0xff]
      %v909 = vld [vmem:[#allocation2 + $0xd1] sm:$0xff]
      %v910 = vld [vmem:[#allocation2 + $0xd9] sm:$0xff]
      %v911 = vld [vmem:[#allocation2 + $0xe1] sm:$0xff]
      %v912 = vld [vmem:[#allocation2 + $0xe9] sm:$0xff]
      %v913 = vld [vmem:[#allocation2 + $0xf1] sm:$0xff]
      %v914 = vld [vmem:[#allocation2 + $0xf9] sm:$0xff]
      %v915 = vld [vmem:[#allocation2 + $0x2] sm:$0xff]
      %v916 = vld [vmem:[#allocation2 + $0xa] sm:$0xff]
      %v917 = vld [vmem:[#allocation2 + $0x12] sm:$0xff]
      %v918 = vld [vmem:[#allocation2 + $0x1a] sm:$0xff]
      %v919 = vld [vmem:[#allocation2 + $0x22] sm:$0xff]
      %v920 = vld [vmem:[#allocation2 + $0x2a] sm:$0xff]
      %v921 = vld [vmem:[#allocation2 + $0x32] sm:$0xff]
      %v922 = vld [vmem:[#allocation2 + $0x3a] sm:$0xff]
      %v923 = vld [vmem:[#allocation2 + $0x42] sm:$0xff]
      %v924 = vld [vmem:[#allocation2 + $0x4a] sm:$0xff]
      %v925 = vld [vmem:[#allocation2 + $0x52] sm:$0xff]
      %v926 = vld [vmem:[#allocation2 + $0x5a] sm:$0xff]
      %v927 = vld [vmem:[#allocation2 + $0x62] sm:$0xff]
      %v928 = vld [vmem:[#allocation2 + $0x6a] sm:$0xff]
      %v929 = vld [vmem:[#allocation2 + $0x72] sm:$0xff]
      %v930 = vld [vmem:[#allocation2 + $0x7a] sm:$0xff]
      %v931 = vld [vmem:[#allocation2 + $0x82] sm:$0xff]
      %v932 = vld [vmem:[#allocation2 + $0x8a] sm:$0xff]
      %v933 = vld [vmem:[#allocation2 + $0x92] sm:$0xff]
      %v934 = vld [vmem:[#allocation2 + $0x9a] sm:$0xff]
      %v935 = vld [vmem:[#allocation2 + $0xa2] sm:$0xff]
      %v936 = vld [vmem:[#allocation2 + $0xaa] sm:$0xff]
      %v937 = vld [vmem:[#allocation2 + $0xb2] sm:$0xff]
      %v938 = vld [vmem:[#allocation2 + $0xba] sm:$0xff]
      %v939 = vld [vmem:[#allocation2 + $0xc2] sm:$0xff]
      %v940 = vld [vmem:[#allocation2 + $0xca] sm:$0xff]
      %v941 = vld [vmem:[#allocation2 + $0xd2] sm:$0xff]
      %v942 = vld [vmem:[#allocation2 + $0xda] sm:$0xff]
      %v943 = vld [vmem:[#allocation2 + $0xe2] sm:$0xff]
      %v944 = vld [vmem:[#allocation2 + $0xea] sm:$0xff]
      %v945 = vld [vmem:[#allocation2 + $0xf2] sm:$0xff]
      %v946 = vld [vmem:[#allocation2 + $0xfa] sm:$0xff]
      %947 = vset.pattern.permute.xlu0 2
      %948 = vperm.xlu0 %947, %v659
      %v949 = vpop.permute.xlu0 %948
      %951 = vset.pattern.permute.xlu0 2
      %952 = vperm.xlu0 %951, %v660
      %v953 = vpop.permute.xlu0 %952
      %955 = vset.pattern.permute.xlu0 2
      %956 = vperm.xlu0 %955, %v661
      %v957 = vpop.permute.xlu0 %956
      %959 = vset.pattern.permute.xlu0 2
      %960 = vperm.xlu0 %959, %v662
      %v961 = vpop.permute.xlu0 %960
      %963 = vset.pattern.permute.xlu0 2
      %964 = vperm.xlu0 %963, %v663
      %v965 = vpop.permute.xlu0 %964
      %967 = vset.pattern.permute.xlu0 2
      %968 = vperm.xlu0 %967, %v664
      %v969 = vpop.permute.xlu0 %968
      %971 = vset.pattern.permute.xlu0 2
      %972 = vperm.xlu0 %971, %v665
      %v973 = vpop.permute.xlu0 %972
      %975 = vset.pattern.permute.xlu0 2
      %976 = vperm.xlu0 %975, %v666
      %v977 = vpop.permute.xlu0 %976
      %979 = vset.pattern.permute.xlu0 2
      %980 = vperm.xlu0 %979, %v667
      %v981 = vpop.permute.xlu0 %980
      %983 = vset.pattern.permute.xlu0 2
      %984 = vperm.xlu0 %983, %v668
      %v985 = vpop.permute.xlu0 %984
      %987 = vset.pattern.permute.xlu0 2
      %988 = vperm.xlu0 %987, %v669
      %v989 = vpop.permute.xlu0 %988
      %991 = vset.pattern.permute.xlu0 2
      %992 = vperm.xlu0 %991, %v670
      %v993 = vpop.permute.xlu0 %992
      %995 = vset.pattern.permute.xlu0 2
      %996 = vperm.xlu0 %995, %v671
      %v997 = vpop.permute.xlu0 %996
      %999 = vset.pattern.permute.xlu0 2
      %1000 = vperm.xlu0 %999, %v672
      %v1001 = vpop.permute.xlu0 %1000
      %1003 = vset.pattern.permute.xlu0 2
      %1004 = vperm.xlu0 %1003, %v673
      %v1005 = vpop.permute.xlu0 %1004
      %1007 = vset.pattern.permute.xlu0 2
      %1008 = vperm.xlu0 %1007, %v674
      %v1009 = vpop.permute.xlu0 %1008
      %1011 = vset.pattern.permute.xlu0 2
      %1012 = vperm.xlu0 %1011, %v675
      %v1013 = vpop.permute.xlu0 %1012
      %1015 = vset.pattern.permute.xlu0 2
      %1016 = vperm.xlu0 %1015, %v676
      %v1017 = vpop.permute.xlu0 %1016
      %1019 = vset.pattern.permute.xlu0 2
      %1020 = vperm.xlu0 %1019, %v677
      %v1021 = vpop.permute.xlu0 %1020
      %1023 = vset.pattern.permute.xlu0 2
      %1024 = vperm.xlu0 %1023, %v678
      %v1025 = vpop.permute.xlu0 %1024
      %1027 = vset.pattern.permute.xlu0 2
      %1028 = vperm.xlu0 %1027, %v679
      %v1029 = vpop.permute.xlu0 %1028
      %1031 = vset.pattern.permute.xlu0 2
      %1032 = vperm.xlu0 %1031, %v680
      %v1033 = vpop.permute.xlu0 %1032
      %1035 = vset.pattern.permute.xlu0 2
      %1036 = vperm.xlu0 %1035, %v681
      %v1037 = vpop.permute.xlu0 %1036
      %1039 = vset.pattern.permute.xlu0 2
      %1040 = vperm.xlu0 %1039, %v682
      %v1041 = vpop.permute.xlu0 %1040
      %1043 = vset.pattern.permute.xlu0 2
      %1044 = vperm.xlu0 %1043, %v683
      %v1045 = vpop.permute.xlu0 %1044
      %1047 = vset.pattern.permute.xlu0 2
      %1048 = vperm.xlu0 %1047, %v684
      %v1049 = vpop.permute.xlu0 %1048
      %1051 = vset.pattern.permute.xlu0 2
      %1052 = vperm.xlu0 %1051, %v685
      %v1053 = vpop.permute.xlu0 %1052
      %1055 = vset.pattern.permute.xlu0 2
      %1056 = vperm.xlu0 %1055, %v686
      %v1057 = vpop.permute.xlu0 %1056
      %1059 = vset.pattern.permute.xlu0 2
      %1060 = vperm.xlu0 %1059, %v687
      %v1061 = vpop.permute.xlu0 %1060
      %1063 = vset.pattern.permute.xlu0 2
      %1064 = vperm.xlu0 %1063, %v688
      %v1065 = vpop.permute.xlu0 %1064
      %1067 = vset.pattern.permute.xlu0 2
      %1068 = vperm.xlu0 %1067, %v689
      %v1069 = vpop.permute.xlu0 %1068
      %1071 = vset.pattern.permute.xlu0 2
      %1072 = vperm.xlu0 %1071, %v690
      %v1073 = vpop.permute.xlu0 %1072
      %v1075 = vmul.f32 %v915, %v949
      %v1076 = vmul.f32 %v916, %v953
      %v1077 = vmul.f32 %v917, %v957
      %v1078 = vmul.f32 %v918, %v961
      %v1079 = vmul.f32 %v919, %v965
      %v1080 = vmul.f32 %v920, %v969
      %v1081 = vmul.f32 %v921, %v973
      %v1082 = vmul.f32 %v922, %v977
      %v1083 = vmul.f32 %v923, %v981
      %v1084 = vmul.f32 %v924, %v985
      %v1085 = vmul.f32 %v925, %v989
      %v1086 = vmul.f32 %v926, %v993
      %v1087 = vmul.f32 %v927, %v997
      %v1088 = vmul.f32 %v928, %v1001
      %v1089 = vmul.f32 %v929, %v1005
      %v1090 = vmul.f32 %v930, %v1009
      %v1091 = vmul.f32 %v931, %v1013
      %v1092 = vmul.f32 %v932, %v1017
      %v1093 = vmul.f32 %v933, %v1021
      %v1094 = vmul.f32 %v934, %v1025
      %v1095 = vmul.f32 %v935, %v1029
      %v1096 = vmul.f32 %v936, %v1033
      %v1097 = vmul.f32 %v937, %v1037
      %v1098 = vmul.f32 %v938, %v1041
      %v1099 = vmul.f32 %v939, %v1045
      %v1100 = vmul.f32 %v940, %v1049
      %v1101 = vmul.f32 %v941, %v1053
      %v1102 = vmul.f32 %v942, %v1057
      %v1103 = vmul.f32 %v943, %v1061
      %v1104 = vmul.f32 %v944, %v1065
      %v1105 = vmul.f32 %v945, %v1069
      %v1106 = vmul.f32 %v946, %v1073
      %v1107 = vld [vmem:[#allocation2 + $0x10] sm:$0xff]
      %v1108 = vld [vmem:[#allocation2 + $0x18] sm:$0xff]
      %v1109 = vld [vmem:[#allocation2 + $0x20] sm:$0xff]
      %v1110 = vld [vmem:[#allocation2 + $0x28] sm:$0xff]
      %v1111 = vld [vmem:[#allocation2 + $0x30] sm:$0xff]
      %v1112 = vld [vmem:[#allocation2 + $0x38] sm:$0xff]
      %v1113 = vld [vmem:[#allocation2 + $0x40] sm:$0xff]
      %v1114 = vld [vmem:[#allocation2 + $0x48] sm:$0xff]
      %v1115 = vld [vmem:[#allocation2 + $0x50] sm:$0xff]
      %v1116 = vld [vmem:[#allocation2 + $0x58] sm:$0xff]
      %v1117 = vld [vmem:[#allocation2 + $0x60] sm:$0xff]
      %v1118 = vld [vmem:[#allocation2 + $0x68] sm:$0xff]
      %v1119 = vld [vmem:[#allocation2 + $0x70] sm:$0xff]
      %v1120 = vld [vmem:[#allocation2 + $0x78] sm:$0xff]
      %v1121 = vld [vmem:[#allocation2 + $0x80] sm:$0xff]
      %v1122 = vld [vmem:[#allocation2 + $0x88] sm:$0xff]
      %v1123 = vld [vmem:[#allocation2 + $0x90] sm:$0xff]
      %v1124 = vld [vmem:[#allocation2 + $0x98] sm:$0xff]
      %v1125 = vld [vmem:[#allocation2 + $0xa0] sm:$0xff]
      %v1126 = vld [vmem:[#allocation2 + $0xa8] sm:$0xff]
      %v1127 = vld [vmem:[#allocation2 + $0xb0] sm:$0xff]
      %v1128 = vld [vmem:[#allocation2 + $0xb8] sm:$0xff]
      %v1129 = vld [vmem:[#allocation2 + $0xc0] sm:$0xff]
      %v1130 = vld [vmem:[#allocation2 + $0xc8] sm:$0xff]
      %v1131 = vld [vmem:[#allocation2 + $0xd0] sm:$0xff]
      %v1132 = vld [vmem:[#allocation2 + $0xd8] sm:$0xff]
      %v1133 = vld [vmem:[#allocation2 + $0xe0] sm:$0xff]
      %v1134 = vld [vmem:[#allocation2 + $0xe8] sm:$0xff]
      %v1135 = vld [vmem:[#allocation2 + $0xf0] sm:$0xff]
      %v1136 = vld [vmem:[#allocation2 + $0xf8] sm:$0xff]
      %v1137 = vld [vmem:[#allocation2 + $0x100] sm:$0xff]
      %v1138 = vld [vmem:[#allocation2 + $0x108] sm:$0xff]
      %v1139 = vmul.f32 %v1107, %v694
      %v1140 = vmul.f32 %v1108, %v699
      %v1141 = vmul.f32 %v1109, %v704
      %v1142 = vmul.f32 %v1110, %v709
      %v1143 = vmul.f32 %v1111, %v714
      %v1144 = vmul.f32 %v1112, %v719
      %v1145 = vmul.f32 %v1113, %v724
      %v1146 = vmul.f32 %v1114, %v729
      %v1147 = vmul.f32 %v1115, %v734
      %v1148 = vmul.f32 %v1116, %v739
      %v1149 = vmul.f32 %v1117, %v744
      %v1150 = vmul.f32 %v1118, %v749
      %v1151 = vmul.f32 %v1119, %v754
      %v1152 = vmul.f32 %v1120, %v759
      %v1153 = vmul.f32 %v1121, %v764
      %v1154 = vmul.f32 %v1122, %v769
      %v1155 = vmul.f32 %v1123, %v774
      %v1156 = vmul.f32 %v1124, %v779
      %v1157 = vmul.f32 %v1125, %v784
      %v1158 = vmul.f32 %v1126, %v789
      %v1159 = vmul.f32 %v1127, %v794
      %v1160 = vmul.f32 %v1128, %v799
      %v1161 = vmul.f32 %v1129, %v804
      %v1162 = vmul.f32 %v1130, %v809
      %v1163 = vmul.f32 %v1131, %v814
      %v1164 = vmul.f32 %v1132, %v819
      %v1165 = vmul.f32 %v1133, %v824
      %v1166 = vmul.f32 %v1134, %v829
      %v1167 = vmul.f32 %v1135, %v834
      %v1168 = vmul.f32 %v1136, %v839
      %v1169 = vmul.f32 %v1137, %v844
      %v1170 = vmul.f32 %v1138, %v849
      %v1171 = vld [vmem:[#allocation2 + $0x11] sm:$0xff]
      %v1172 = vld [vmem:[#allocation2 + $0x19] sm:$0xff]
      %v1173 = vld [vmem:[#allocation2 + $0x21] sm:$0xff]
      %v1174 = vld [vmem:[#allocation2 + $0x29] sm:$0xff]
      %v1175 = vld [vmem:[#allocation2 + $0x31] sm:$0xff]
      %v1176 = vld [vmem:[#allocation2 + $0x39] sm:$0xff]
      %v1177 = vld [vmem:[#allocation2 + $0x41] sm:$0xff]
      %v1178 = vld [vmem:[#allocation2 + $0x49] sm:$0xff]
      %v1179 = vld [vmem:[#allocation2 + $0x51] sm:$0xff]
      %v1180 = vld [vmem:[#allocation2 + $0x59] sm:$0xff]
      %v1181 = vld [vmem:[#allocation2 + $0x61] sm:$0xff]
      %v1182 = vld [vmem:[#allocation2 + $0x69] sm:$0xff]
      %v1183 = vld [vmem:[#allocation2 + $0x71] sm:$0xff]
      %v1184 = vld [vmem:[#allocation2 + $0x79] sm:$0xff]
      %v1185 = vld [vmem:[#allocation2 + $0x81] sm:$0xff]
      %v1186 = vld [vmem:[#allocation2 + $0x89] sm:$0xff]
      %v1187 = vld [vmem:[#allocation2 + $0x91] sm:$0xff]
      %v1188 = vld [vmem:[#allocation2 + $0x99] sm:$0xff]
      %v1189 = vld [vmem:[#allocation2 + $0xa1] sm:$0xff]
      %v1190 = vld [vmem:[#allocation2 + $0xa9] sm:$0xff]
      %v1191 = vld [vmem:[#allocation2 + $0xb1] sm:$0xff]
      %v1192 = vld [vmem:[#allocation2 + $0xb9] sm:$0xff]
      %v1193 = vld [vmem:[#allocation2 + $0xc1] sm:$0xff]
      %v1194 = vld [vmem:[#allocation2 + $0xc9] sm:$0xff]
      %v1195 = vld [vmem:[#allocation2 + $0xd1] sm:$0xff]
      %v1196 = vld [vmem:[#allocation2 + $0xd9] sm:$0xff]
      %v1197 = vld [vmem:[#allocation2 + $0xe1] sm:$0xff]
      %v1198 = vld [vmem:[#allocation2 + $0xe9] sm:$0xff]
      %v1199 = vld [vmem:[#allocation2 + $0xf1] sm:$0xff]
      %v1200 = vld [vmem:[#allocation2 + $0xf9] sm:$0xff]
      %v1201 = vld [vmem:[#allocation2 + $0x101] sm:$0xff]
      %v1202 = vld [vmem:[#allocation2 + $0x109] sm:$0xff]
      %v1203 = vld [vmem:[#allocation2 + $0x12] sm:$0xff]
      %v1204 = vld [vmem:[#allocation2 + $0x1a] sm:$0xff]
      %v1205 = vld [vmem:[#allocation2 + $0x22] sm:$0xff]
      %v1206 = vld [vmem:[#allocation2 + $0x2a] sm:$0xff]
      %v1207 = vld [vmem:[#allocation2 + $0x32] sm:$0xff]
      %v1208 = vld [vmem:[#allocation2 + $0x3a] sm:$0xff]
      %v1209 = vld [vmem:[#allocation2 + $0x42] sm:$0xff]
      %v1210 = vld [vmem:[#allocation2 + $0x4a] sm:$0xff]
      %v1211 = vld [vmem:[#allocation2 + $0x52] sm:$0xff]
      %v1212 = vld [vmem:[#allocation2 + $0x5a] sm:$0xff]
      %v1213 = vld [vmem:[#allocation2 + $0x62] sm:$0xff]
      %v1214 = vld [vmem:[#allocation2 + $0x6a] sm:$0xff]
      %v1215 = vld [vmem:[#allocation2 + $0x72] sm:$0xff]
      %v1216 = vld [vmem:[#allocation2 + $0x7a] sm:$0xff]
      %v1217 = vld [vmem:[#allocation2 + $0x82] sm:$0xff]
      %v1218 = vld [vmem:[#allocation2 + $0x8a] sm:$0xff]
      %v1219 = vld [vmem:[#allocation2 + $0x92] sm:$0xff]
      %v1220 = vld [vmem:[#allocation2 + $0x9a] sm:$0xff]
      %v1221 = vld [vmem:[#allocation2 + $0xa2] sm:$0xff]
      %v1222 = vld [vmem:[#allocation2 + $0xaa] sm:$0xff]
      %v1223 = vld [vmem:[#allocation2 + $0xb2] sm:$0xff]
      %v1224 = vld [vmem:[#allocation2 + $0xba] sm:$0xff]
      %v1225 = vld [vmem:[#allocation2 + $0xc2] sm:$0xff]
      %v1226 = vld [vmem:[#allocation2 + $0xca] sm:$0xff]
      %v1227 = vld [vmem:[#allocation2 + $0xd2] sm:$0xff]
      %v1228 = vld [vmem:[#allocation2 + $0xda] sm:$0xff]
      %v1229 = vld [vmem:[#allocation2 + $0xe2] sm:$0xff]
      %v1230 = vld [vmem:[#allocation2 + $0xea] sm:$0xff]
      %v1231 = vld [vmem:[#allocation2 + $0xf2] sm:$0xff]
      %v1232 = vld [vmem:[#allocation2 + $0xfa] sm:$0xff]
      %v1233 = vld [vmem:[#allocation2 + $0x102] sm:$0xff]
      %v1234 = vld [vmem:[#allocation2 + $0x10a] sm:$0xff]
      %v1235 = vmul.f32 %v1203, %v949
      %v1236 = vmul.f32 %v1204, %v953
      %v1237 = vmul.f32 %v1205, %v957
      %v1238 = vmul.f32 %v1206, %v961
      %v1239 = vmul.f32 %v1207, %v965
      %v1240 = vmul.f32 %v1208, %v969
      %v1241 = vmul.f32 %v1209, %v973
      %v1242 = vmul.f32 %v1210, %v977
      %v1243 = vmul.f32 %v1211, %v981
      %v1244 = vmul.f32 %v1212, %v985
      %v1245 = vmul.f32 %v1213, %v989
      %v1246 = vmul.f32 %v1214, %v993
      %v1247 = vmul.f32 %v1215, %v997
      %v1248 = vmul.f32 %v1216, %v1001
      %v1249 = vmul.f32 %v1217, %v1005
      %v1250 = vmul.f32 %v1218, %v1009
      %v1251 = vmul.f32 %v1219, %v1013
      %v1252 = vmul.f32 %v1220, %v1017
      %v1253 = vmul.f32 %v1221, %v1021
      %v1254 = vmul.f32 %v1222, %v1025
      %v1255 = vmul.f32 %v1223, %v1029
      %v1256 = vmul.f32 %v1224, %v1033
      %v1257 = vmul.f32 %v1225, %v1037
      %v1258 = vmul.f32 %v1226, %v1041
      %v1259 = vmul.f32 %v1227, %v1045
      %v1260 = vmul.f32 %v1228, %v1049
      %v1261 = vmul.f32 %v1229, %v1053
      %v1262 = vmul.f32 %v1230, %v1057
      %v1263 = vmul.f32 %v1231, %v1061
      %v1264 = vmul.f32 %v1232, %v1065
      %v1265 = vmul.f32 %v1233, %v1069
      %v1266 = vmul.f32 %v1234, %v1073
      %v1267 = vld [vmem:[#allocation2 + $0x110] sm:$0xff]
      %v1268 = vld [vmem:[#allocation2 + $0x118] sm:$0xff]
      %v1269 = vmul.f32 %v1109, %v694
      %v1270 = vmul.f32 %v1110, %v699
      %v1271 = vmul.f32 %v1111, %v704
      %v1272 = vmul.f32 %v1112, %v709
      %v1273 = vmul.f32 %v1113, %v714
      %v1274 = vmul.f32 %v1114, %v719
      %v1275 = vmul.f32 %v1115, %v724
      %v1276 = vmul.f32 %v1116, %v729
      %v1277 = vmul.f32 %v1117, %v734
      %v1278 = vmul.f32 %v1118, %v739
      %v1279 = vmul.f32 %v1119, %v744
      %v1280 = vmul.f32 %v1120, %v749
      %v1281 = vmul.f32 %v1121, %v754
      %v1282 = vmul.f32 %v1122, %v759
      %v1283 = vmul.f32 %v1123, %v764
      %v1284 = vmul.f32 %v1124, %v769
      %v1285 = vmul.f32 %v1125, %v774
      %v1286 = vmul.f32 %v1126, %v779
      %v1287 = vmul.f32 %v1127, %v784
      %v1288 = vmul.f32 %v1128, %v789
      %v1289 = vmul.f32 %v1129, %v794
      %v1290 = vmul.f32 %v1130, %v799
      %v1291 = vmul.f32 %v1131, %v804
      %v1292 = vmul.f32 %v1132, %v809
      %v1293 = vmul.f32 %v1133, %v814
      %v1294 = vmul.f32 %v1134, %v819
      %v1295 = vmul.f32 %v1135, %v824
      %v1296 = vmul.f32 %v1136, %v829
      %v1297 = vmul.f32 %v1137, %v834
      %v1298 = vmul.f32 %v1138, %v839
      %v1299 = vmul.f32 %v1267, %v844
      %v1300 = vmul.f32 %v1268, %v849
      %v1301 = vld [vmem:[#allocation2 + $0x111] sm:$0xff]
      %v1302 = vld [vmem:[#allocation2 + $0x119] sm:$0xff]
      %v1303 = vld [vmem:[#allocation2 + $0x112] sm:$0xff]
      %v1304 = vld [vmem:[#allocation2 + $0x11a] sm:$0xff]
      %v1305 = vmul.f32 %v1205, %v949
      %v1306 = vmul.f32 %v1206, %v953
      %v1307 = vmul.f32 %v1207, %v957
      %v1308 = vmul.f32 %v1208, %v961
      %v1309 = vmul.f32 %v1209, %v965
      %v1310 = vmul.f32 %v1210, %v969
      %v1311 = vmul.f32 %v1211, %v973
      %v1312 = vmul.f32 %v1212, %v977
      %v1313 = vmul.f32 %v1213, %v981
      %v1314 = vmul.f32 %v1214, %v985
      %v1315 = vmul.f32 %v1215, %v989
      %v1316 = vmul.f32 %v1216, %v993
      %v1317 = vmul.f32 %v1217, %v997
      %v1318 = vmul.f32 %v1218, %v1001
      %v1319 = vmul.f32 %v1219, %v1005
      %v1320 = vmul.f32 %v1220, %v1009
      %v1321 = vmul.f32 %v1221, %v1013
      %v1322 = vmul.f32 %v1222, %v1017
      %v1323 = vmul.f32 %v1223, %v1021
      %v1324 = vmul.f32 %v1224, %v1025
      %v1325 = vmul.f32 %v1225, %v1029
      %v1326 = vmul.f32 %v1226, %v1033
      %v1327 = vmul.f32 %v1227, %v1037
      %v1328 = vmul.f32 %v1228, %v1041
      %v1329 = vmul.f32 %v1229, %v1045
      %v1330 = vmul.f32 %v1230, %v1049
      %v1331 = vmul.f32 %v1231, %v1053
      %v1332 = vmul.f32 %v1232, %v1057
      %v1333 = vmul.f32 %v1233, %v1061
      %v1334 = vmul.f32 %v1234, %v1065
      %v1335 = vmul.f32 %v1303, %v1069
      %v1336 = vmul.f32 %v1304, %v1073
      %1369 = vrot.lane.b32.xlu0 %v883, 8
      %v1370 = vpop.permute.xlu0 %1369
      %1371 = vrot.lane.b32.xlu0 %v884, 8
      %v1372 = vpop.permute.xlu0 %1371
      %1373 = vrot.lane.b32.xlu0 %v885, 8
      %v1374 = vpop.permute.xlu0 %1373
      %1375 = vrot.lane.b32.xlu0 %v886, 8
      %v1376 = vpop.permute.xlu0 %1375
      %1377 = vrot.lane.b32.xlu0 %v887, 8
      %v1378 = vpop.permute.xlu0 %1377
      %1379 = vrot.lane.b32.xlu0 %v888, 8
      %v1380 = vpop.permute.xlu0 %1379
      %1381 = vrot.lane.b32.xlu0 %v889, 8
      %v1382 = vpop.permute.xlu0 %1381
      %1383 = vrot.lane.b32.xlu0 %v890, 8
      %v1384 = vpop.permute.xlu0 %1383
      %1385 = vrot.lane.b32.xlu0 %v891, 8
      %v1386 = vpop.permute.xlu0 %1385
      %1387 = vrot.lane.b32.xlu0 %v892, 8
      %v1388 = vpop.permute.xlu0 %1387
      %1389 = vrot.lane.b32.xlu0 %v893, 8
      %v1390 = vpop.permute.xlu0 %1389
      %1391 = vrot.lane.b32.xlu0 %v894, 8
      %v1392 = vpop.permute.xlu0 %1391
      %1393 = vrot.lane.b32.xlu0 %v895, 8
      %v1394 = vpop.permute.xlu0 %1393
      %1395 = vrot.lane.b32.xlu0 %v896, 8
      %v1396 = vpop.permute.xlu0 %1395
      %1397 = vrot.lane.b32.xlu0 %v897, 8
      %v1398 = vpop.permute.xlu0 %1397
      %1399 = vrot.lane.b32.xlu0 %v898, 8
      %v1400 = vpop.permute.xlu0 %1399
      %1401 = vrot.lane.b32.xlu0 %v899, 8
      %v1402 = vpop.permute.xlu0 %1401
      %1403 = vrot.lane.b32.xlu0 %v900, 8
      %v1404 = vpop.permute.xlu0 %1403
      %1405 = vrot.lane.b32.xlu0 %v901, 8
      %v1406 = vpop.permute.xlu0 %1405
      %1407 = vrot.lane.b32.xlu0 %v902, 8
      %v1408 = vpop.permute.xlu0 %1407
      %1409 = vrot.lane.b32.xlu0 %v903, 8
      %v1410 = vpop.permute.xlu0 %1409
      %1411 = vrot.lane.b32.xlu0 %v904, 8
      %v1412 = vpop.permute.xlu0 %1411
      %1413 = vrot.lane.b32.xlu0 %v905, 8
      %v1414 = vpop.permute.xlu0 %1413
      %1415 = vrot.lane.b32.xlu0 %v906, 8
      %v1416 = vpop.permute.xlu0 %1415
      %1417 = vrot.lane.b32.xlu0 %v907, 8
      %v1418 = vpop.permute.xlu0 %1417
      %1419 = vrot.lane.b32.xlu0 %v908, 8
      %v1420 = vpop.permute.xlu0 %1419
      %1421 = vrot.lane.b32.xlu0 %v909, 8
      %v1422 = vpop.permute.xlu0 %1421
      %1423 = vrot.lane.b32.xlu0 %v910, 8
      %v1424 = vpop.permute.xlu0 %1423
      %1425 = vrot.lane.b32.xlu0 %v911, 8
      %v1426 = vpop.permute.xlu0 %1425
      %1427 = vrot.lane.b32.xlu0 %v912, 8
      %v1428 = vpop.permute.xlu0 %1427
      %1429 = vrot.lane.b32.xlu0 %v913, 8
      %v1430 = vpop.permute.xlu0 %1429
      %1431 = vrot.lane.b32.xlu0 %v914, 8
      %v1432 = vpop.permute.xlu0 %1431
      %1497 = vrot.lane.b32.xlu0 %v1075, 16
      %v1498 = vpop.permute.xlu0 %1497
      %1499 = vrot.lane.b32.xlu0 %v1076, 16
      %v1500 = vpop.permute.xlu0 %1499
      %1501 = vrot.lane.b32.xlu0 %v1077, 16
      %v1502 = vpop.permute.xlu0 %1501
      %1503 = vrot.lane.b32.xlu0 %v1078, 16
      %v1504 = vpop.permute.xlu0 %1503
      %1505 = vrot.lane.b32.xlu0 %v1079, 16
      %v1506 = vpop.permute.xlu0 %1505
      %1507 = vrot.lane.b32.xlu0 %v1080, 16
      %v1508 = vpop.permute.xlu0 %1507
      %1509 = vrot.lane.b32.xlu0 %v1081, 16
      %v1510 = vpop.permute.xlu0 %1509
      %1511 = vrot.lane.b32.xlu0 %v1082, 16
      %v1512 = vpop.permute.xlu0 %1511
      %1513 = vrot.lane.b32.xlu0 %v1083, 16
      %v1514 = vpop.permute.xlu0 %1513
      %1515 = vrot.lane.b32.xlu0 %v1084, 16
      %v1516 = vpop.permute.xlu0 %1515
      %1517 = vrot.lane.b32.xlu0 %v1085, 16
      %v1518 = vpop.permute.xlu0 %1517
      %1519 = vrot.lane.b32.xlu0 %v1086, 16
      %v1520 = vpop.permute.xlu0 %1519
      %1521 = vrot.lane.b32.xlu0 %v1087, 16
      %v1522 = vpop.permute.xlu0 %1521
      %1523 = vrot.lane.b32.xlu0 %v1088, 16
      %v1524 = vpop.permute.xlu0 %1523
      %1525 = vrot.lane.b32.xlu0 %v1089, 16
      %v1526 = vpop.permute.xlu0 %1525
      %1527 = vrot.lane.b32.xlu0 %v1090, 16
      %v1528 = vpop.permute.xlu0 %1527
      %1529 = vrot.lane.b32.xlu0 %v1091, 16
      %v1530 = vpop.permute.xlu0 %1529
      %1531 = vrot.lane.b32.xlu0 %v1092, 16
      %v1532 = vpop.permute.xlu0 %1531
      %1533 = vrot.lane.b32.xlu0 %v1093, 16
      %v1534 = vpop.permute.xlu0 %1533
      %1535 = vrot.lane.b32.xlu0 %v1094, 16
      %v1536 = vpop.permute.xlu0 %1535
      %1537 = vrot.lane.b32.xlu0 %v1095, 16
      %v1538 = vpop.permute.xlu0 %1537
      %1539 = vrot.lane.b32.xlu0 %v1096, 16
      %v1540 = vpop.permute.xlu0 %1539
      %1541 = vrot.lane.b32.xlu0 %v1097, 16
      %v1542 = vpop.permute.xlu0 %1541
      %1543 = vrot.lane.b32.xlu0 %v1098, 16
      %v1544 = vpop.permute.xlu0 %1543
      %1545 = vrot.lane.b32.xlu0 %v1099, 16
      %v1546 = vpop.permute.xlu0 %1545
      %1547 = vrot.lane.b32.xlu0 %v1100, 16
      %v1548 = vpop.permute.xlu0 %1547
      %1549 = vrot.lane.b32.xlu0 %v1101, 16
      %v1550 = vpop.permute.xlu0 %1549
      %1551 = vrot.lane.b32.xlu0 %v1102, 16
      %v1552 = vpop.permute.xlu0 %1551
      %1553 = vrot.lane.b32.xlu0 %v1103, 16
      %v1554 = vpop.permute.xlu0 %1553
      %1555 = vrot.lane.b32.xlu0 %v1104, 16
      %v1556 = vpop.permute.xlu0 %1555
      %1557 = vrot.lane.b32.xlu0 %v1105, 16
      %v1558 = vpop.permute.xlu0 %1557
      %1559 = vrot.lane.b32.xlu0 %v1106, 16
      %v1560 = vpop.permute.xlu0 %1559
      %1625 = vrot.lane.b32.xlu0 %v1139, 24
      %v1626 = vpop.permute.xlu0 %1625
      %1627 = vrot.lane.b32.xlu0 %v1140, 24
      %v1628 = vpop.permute.xlu0 %1627
      %1629 = vrot.lane.b32.xlu0 %v1141, 24
      %v1630 = vpop.permute.xlu0 %1629
      %1631 = vrot.lane.b32.xlu0 %v1142, 24
      %v1632 = vpop.permute.xlu0 %1631
      %1633 = vrot.lane.b32.xlu0 %v1143, 24
      %v1634 = vpop.permute.xlu0 %1633
      %1635 = vrot.lane.b32.xlu0 %v1144, 24
      %v1636 = vpop.permute.xlu0 %1635
      %1637 = vrot.lane.b32.xlu0 %v1145, 24
      %v1638 = vpop.permute.xlu0 %1637
      %1639 = vrot.lane.b32.xlu0 %v1146, 24
      %v1640 = vpop.permute.xlu0 %1639
      %1641 = vrot.lane.b32.xlu0 %v1147, 24
      %v1642 = vpop.permute.xlu0 %1641
      %1643 = vrot.lane.b32.xlu0 %v1148, 24
      %v1644 = vpop.permute.xlu0 %1643
      %1645 = vrot.lane.b32.xlu0 %v1149, 24
      %v1646 = vpop.permute.xlu0 %1645
      %1647 = vrot.lane.b32.xlu0 %v1150, 24
      %v1648 = vpop.permute.xlu0 %1647
      %1649 = vrot.lane.b32.xlu0 %v1151, 24
      %v1650 = vpop.permute.xlu0 %1649
      %1651 = vrot.lane.b32.xlu0 %v1152, 24
      %v1652 = vpop.permute.xlu0 %1651
      %1653 = vrot.lane.b32.xlu0 %v1153, 24
      %v1654 = vpop.permute.xlu0 %1653
      %1655 = vrot.lane.b32.xlu0 %v1154, 24
      %v1656 = vpop.permute.xlu0 %1655
      %1657 = vrot.lane.b32.xlu0 %v1155, 24
      %v1658 = vpop.permute.xlu0 %1657
      %1659 = vrot.lane.b32.xlu0 %v1156, 24
      %v1660 = vpop.permute.xlu0 %1659
      %1661 = vrot.lane.b32.xlu0 %v1157, 24
      %v1662 = vpop.permute.xlu0 %1661
      %1663 = vrot.lane.b32.xlu0 %v1158, 24
      %v1664 = vpop.permute.xlu0 %1663
      %1665 = vrot.lane.b32.xlu0 %v1159, 24
      %v1666 = vpop.permute.xlu0 %1665
      %1667 = vrot.lane.b32.xlu0 %v1160, 24
      %v1668 = vpop.permute.xlu0 %1667
      %1669 = vrot.lane.b32.xlu0 %v1161, 24
      %v1670 = vpop.permute.xlu0 %1669
      %1671 = vrot.lane.b32.xlu0 %v1162, 24
      %v1672 = vpop.permute.xlu0 %1671
      %1673 = vrot.lane.b32.xlu0 %v1163, 24
      %v1674 = vpop.permute.xlu0 %1673
      %1675 = vrot.lane.b32.xlu0 %v1164, 24
      %v1676 = vpop.permute.xlu0 %1675
      %1677 = vrot.lane.b32.xlu0 %v1165, 24
      %v1678 = vpop.permute.xlu0 %1677
      %1679 = vrot.lane.b32.xlu0 %v1166, 24
      %v1680 = vpop.permute.xlu0 %1679
      %1681 = vrot.lane.b32.xlu0 %v1167, 24
      %v1682 = vpop.permute.xlu0 %1681
      %1683 = vrot.lane.b32.xlu0 %v1168, 24
      %v1684 = vpop.permute.xlu0 %1683
      %1685 = vrot.lane.b32.xlu0 %v1169, 24
      %v1686 = vpop.permute.xlu0 %1685
      %1687 = vrot.lane.b32.xlu0 %v1170, 24
      %v1688 = vpop.permute.xlu0 %1687
      %1753 = vrot.lane.b32.xlu0 %v1171, 32
      %v1754 = vpop.permute.xlu0 %1753
      %1755 = vrot.lane.b32.xlu0 %v1172, 32
      %v1756 = vpop.permute.xlu0 %1755
      %1757 = vrot.lane.b32.xlu0 %v1173, 32
      %v1758 = vpop.permute.xlu0 %1757
      %1759 = vrot.lane.b32.xlu0 %v1174, 32
      %v1760 = vpop.permute.xlu0 %1759
      %1761 = vrot.lane.b32.xlu0 %v1175, 32
      %v1762 = vpop.permute.xlu0 %1761
      %1763 = vrot.lane.b32.xlu0 %v1176, 32
      %v1764 = vpop.permute.xlu0 %1763
      %1765 = vrot.lane.b32.xlu0 %v1177, 32
      %v1766 = vpop.permute.xlu0 %1765
      %1767 = vrot.lane.b32.xlu0 %v1178, 32
      %v1768 = vpop.permute.xlu0 %1767
      %1769 = vrot.lane.b32.xlu0 %v1179, 32
      %v1770 = vpop.permute.xlu0 %1769
      %1771 = vrot.lane.b32.xlu0 %v1180, 32
      %v1772 = vpop.permute.xlu0 %1771
      %1773 = vrot.lane.b32.xlu0 %v1181, 32
      %v1774 = vpop.permute.xlu0 %1773
      %1775 = vrot.lane.b32.xlu0 %v1182, 32
      %v1776 = vpop.permute.xlu0 %1775
      %1777 = vrot.lane.b32.xlu0 %v1183, 32
      %v1778 = vpop.permute.xlu0 %1777
      %1779 = vrot.lane.b32.xlu0 %v1184, 32
      %v1780 = vpop.permute.xlu0 %1779
      %1781 = vrot.lane.b32.xlu0 %v1185, 32
      %v1782 = vpop.permute.xlu0 %1781
      %1783 = vrot.lane.b32.xlu0 %v1186, 32
      %v1784 = vpop.permute.xlu0 %1783
      %1785 = vrot.lane.b32.xlu0 %v1187, 32
      %v1786 = vpop.permute.xlu0 %1785
      %1787 = vrot.lane.b32.xlu0 %v1188, 32
      %v1788 = vpop.permute.xlu0 %1787
      %1789 = vrot.lane.b32.xlu0 %v1189, 32
      %v1790 = vpop.permute.xlu0 %1789
      %1791 = vrot.lane.b32.xlu0 %v1190, 32
      %v1792 = vpop.permute.xlu0 %1791
      %1793 = vrot.lane.b32.xlu0 %v1191, 32
      %v1794 = vpop.permute.xlu0 %1793
      %1795 = vrot.lane.b32.xlu0 %v1192, 32
      %v1796 = vpop.permute.xlu0 %1795
      %1797 = vrot.lane.b32.xlu0 %v1193, 32
      %v1798 = vpop.permute.xlu0 %1797
      %1799 = vrot.lane.b32.xlu0 %v1194, 32
      %v1800 = vpop.permute.xlu0 %1799
      %1801 = vrot.lane.b32.xlu0 %v1195, 32
      %v1802 = vpop.permute.xlu0 %1801
      %1803 = vrot.lane.b32.xlu0 %v1196, 32
      %v1804 = vpop.permute.xlu0 %1803
      %1805 = vrot.lane.b32.xlu0 %v1197, 32
      %v1806 = vpop.permute.xlu0 %1805
      %1807 = vrot.lane.b32.xlu0 %v1198, 32
      %v1808 = vpop.permute.xlu0 %1807
      %1809 = vrot.lane.b32.xlu0 %v1199, 32
      %v1810 = vpop.permute.xlu0 %1809
      %1811 = vrot.lane.b32.xlu0 %v1200, 32
      %v1812 = vpop.permute.xlu0 %1811
      %1813 = vrot.lane.b32.xlu0 %v1201, 32
      %v1814 = vpop.permute.xlu0 %1813
      %1815 = vrot.lane.b32.xlu0 %v1202, 32
      %v1816 = vpop.permute.xlu0 %1815
      %1881 = vrot.lane.b32.xlu0 %v1235, 40
      %v1882 = vpop.permute.xlu0 %1881
      %1883 = vrot.lane.b32.xlu0 %v1236, 40
      %v1884 = vpop.permute.xlu0 %1883
      %1885 = vrot.lane.b32.xlu0 %v1237, 40
      %v1886 = vpop.permute.xlu0 %1885
      %1887 = vrot.lane.b32.xlu0 %v1238, 40
      %v1888 = vpop.permute.xlu0 %1887
      %1889 = vrot.lane.b32.xlu0 %v1239, 40
      %v1890 = vpop.permute.xlu0 %1889
      %1891 = vrot.lane.b32.xlu0 %v1240, 40
      %v1892 = vpop.permute.xlu0 %1891
      %1893 = vrot.lane.b32.xlu0 %v1241, 40
      %v1894 = vpop.permute.xlu0 %1893
      %1895 = vrot.lane.b32.xlu0 %v1242, 40
      %v1896 = vpop.permute.xlu0 %1895
      %1897 = vrot.lane.b32.xlu0 %v1243, 40
      %v1898 = vpop.permute.xlu0 %1897
      %1899 = vrot.lane.b32.xlu0 %v1244, 40
      %v1900 = vpop.permute.xlu0 %1899
      %1901 = vrot.lane.b32.xlu0 %v1245, 40
      %v1902 = vpop.permute.xlu0 %1901
      %1903 = vrot.lane.b32.xlu0 %v1246, 40
      %v1904 = vpop.permute.xlu0 %1903
      %1905 = vrot.lane.b32.xlu0 %v1247, 40
      %v1906 = vpop.permute.xlu0 %1905
      %1907 = vrot.lane.b32.xlu0 %v1248, 40
      %v1908 = vpop.permute.xlu0 %1907
      %1909 = vrot.lane.b32.xlu0 %v1249, 40
      %v1910 = vpop.permute.xlu0 %1909
      %1911 = vrot.lane.b32.xlu0 %v1250, 40
      %v1912 = vpop.permute.xlu0 %1911
      %1913 = vrot.lane.b32.xlu0 %v1251, 40
      %v1914 = vpop.permute.xlu0 %1913
      %1915 = vrot.lane.b32.xlu0 %v1252, 40
      %v1916 = vpop.permute.xlu0 %1915
      %1917 = vrot.lane.b32.xlu0 %v1253, 40
      %v1918 = vpop.permute.xlu0 %1917
      %1919 = vrot.lane.b32.xlu0 %v1254, 40
      %v1920 = vpop.permute.xlu0 %1919
      %1921 = vrot.lane.b32.xlu0 %v1255, 40
      %v1922 = vpop.permute.xlu0 %1921
      %1923 = vrot.lane.b32.xlu0 %v1256, 40
      %v1924 = vpop.permute.xlu0 %1923
      %1925 = vrot.lane.b32.xlu0 %v1257, 40
      %v1926 = vpop.permute.xlu0 %1925
      %1927 = vrot.lane.b32.xlu0 %v1258, 40
      %v1928 = vpop.permute.xlu0 %1927
      %1929 = vrot.lane.b32.xlu0 %v1259, 40
      %v1930 = vpop.permute.xlu0 %1929
      %1931 = vrot.lane.b32.xlu0 %v1260, 40
      %v1932 = vpop.permute.xlu0 %1931
      %1933 = vrot.lane.b32.xlu0 %v1261, 40
      %v1934 = vpop.permute.xlu0 %1933
      %1935 = vrot.lane.b32.xlu0 %v1262, 40
      %v1936 = vpop.permute.xlu0 %1935
      %1937 = vrot.lane.b32.xlu0 %v1263, 40
      %v1938 = vpop.permute.xlu0 %1937
      %1939 = vrot.lane.b32.xlu0 %v1264, 40
      %v1940 = vpop.permute.xlu0 %1939
      %1941 = vrot.lane.b32.xlu0 %v1265, 40
      %v1942 = vpop.permute.xlu0 %1941
      %1943 = vrot.lane.b32.xlu0 %v1266, 40
      %v1944 = vpop.permute.xlu0 %1943
      %2009 = vrot.lane.b32.xlu0 %v1269, 48
      %v2010 = vpop.permute.xlu0 %2009
      %2011 = vrot.lane.b32.xlu0 %v1270, 48
      %v2012 = vpop.permute.xlu0 %2011
      %2013 = vrot.lane.b32.xlu0 %v1271, 48
      %v2014 = vpop.permute.xlu0 %2013
      %2015 = vrot.lane.b32.xlu0 %v1272, 48
      %v2016 = vpop.permute.xlu0 %2015
      %2017 = vrot.lane.b32.xlu0 %v1273, 48
      %v2018 = vpop.permute.xlu0 %2017
      %2019 = vrot.lane.b32.xlu0 %v1274, 48
      %v2020 = vpop.permute.xlu0 %2019
      %2021 = vrot.lane.b32.xlu0 %v1275, 48
      %v2022 = vpop.permute.xlu0 %2021
      %2023 = vrot.lane.b32.xlu0 %v1276, 48
      %v2024 = vpop.permute.xlu0 %2023
      %2025 = vrot.lane.b32.xlu0 %v1277, 48
      %v2026 = vpop.permute.xlu0 %2025
      %2027 = vrot.lane.b32.xlu0 %v1278, 48
      %v2028 = vpop.permute.xlu0 %2027
      %2029 = vrot.lane.b32.xlu0 %v1279, 48
      %v2030 = vpop.permute.xlu0 %2029
      %2031 = vrot.lane.b32.xlu0 %v1280, 48
      %v2032 = vpop.permute.xlu0 %2031
      %2033 = vrot.lane.b32.xlu0 %v1281, 48
      %v2034 = vpop.permute.xlu0 %2033
      %2035 = vrot.lane.b32.xlu0 %v1282, 48
      %v2036 = vpop.permute.xlu0 %2035
      %2037 = vrot.lane.b32.xlu0 %v1283, 48
      %v2038 = vpop.permute.xlu0 %2037
      %2039 = vrot.lane.b32.xlu0 %v1284, 48
      %v2040 = vpop.permute.xlu0 %2039
      %2041 = vrot.lane.b32.xlu0 %v1285, 48
      %v2042 = vpop.permute.xlu0 %2041
      %2043 = vrot.lane.b32.xlu0 %v1286, 48
      %v2044 = vpop.permute.xlu0 %2043
      %2045 = vrot.lane.b32.xlu0 %v1287, 48
      %v2046 = vpop.permute.xlu0 %2045
      %2047 = vrot.lane.b32.xlu0 %v1288, 48
      %v2048 = vpop.permute.xlu0 %2047
      %2049 = vrot.lane.b32.xlu0 %v1289, 48
      %v2050 = vpop.permute.xlu0 %2049
      %2051 = vrot.lane.b32.xlu0 %v1290, 48
      %v2052 = vpop.permute.xlu0 %2051
      %2053 = vrot.lane.b32.xlu0 %v1291, 48
      %v2054 = vpop.permute.xlu0 %2053
      %2055 = vrot.lane.b32.xlu0 %v1292, 48
      %v2056 = vpop.permute.xlu0 %2055
      %2057 = vrot.lane.b32.xlu0 %v1293, 48
      %v2058 = vpop.permute.xlu0 %2057
      %2059 = vrot.lane.b32.xlu0 %v1294, 48
      %v2060 = vpop.permute.xlu0 %2059
      %2061 = vrot.lane.b32.xlu0 %v1295, 48
      %v2062 = vpop.permute.xlu0 %2061
      %2063 = vrot.lane.b32.xlu0 %v1296, 48
      %v2064 = vpop.permute.xlu0 %2063
      %2065 = vrot.lane.b32.xlu0 %v1297, 48
      %v2066 = vpop.permute.xlu0 %2065
      %2067 = vrot.lane.b32.xlu0 %v1298, 48
      %v2068 = vpop.permute.xlu0 %2067
      %2069 = vrot.lane.b32.xlu0 %v1299, 48
      %v2070 = vpop.permute.xlu0 %2069
      %2071 = vrot.lane.b32.xlu0 %v1300, 48
      %v2072 = vpop.permute.xlu0 %2071
      %2107 = vrot.lane.b32.xlu0 %v1173, 56
      %v2108 = vpop.permute.xlu0 %2107
      %2109 = vrot.lane.b32.xlu0 %v1174, 56
      %v2110 = vpop.permute.xlu0 %2109
      %2111 = vrot.lane.b32.xlu0 %v1175, 56
      %v2112 = vpop.permute.xlu0 %2111
      %2113 = vrot.lane.b32.xlu0 %v1176, 56
      %v2114 = vpop.permute.xlu0 %2113
      %2115 = vrot.lane.b32.xlu0 %v1177, 56
      %v2116 = vpop.permute.xlu0 %2115
      %2117 = vrot.lane.b32.xlu0 %v1178, 56
      %v2118 = vpop.permute.xlu0 %2117
      %2119 = vrot.lane.b32.xlu0 %v1179, 56
      %v2120 = vpop.permute.xlu0 %2119
      %2121 = vrot.lane.b32.xlu0 %v1180, 56
      %v2122 = vpop.permute.xlu0 %2121
      %2123 = vrot.lane.b32.xlu0 %v1181, 56
      %v2124 = vpop.permute.xlu0 %2123
      %2125 = vrot.lane.b32.xlu0 %v1182, 56
      %v2126 = vpop.permute.xlu0 %2125
      %2127 = vrot.lane.b32.xlu0 %v1183, 56
      %v2128 = vpop.permute.xlu0 %2127
      %2129 = vrot.lane.b32.xlu0 %v1184, 56
      %v2130 = vpop.permute.xlu0 %2129
      %2131 = vrot.lane.b32.xlu0 %v1185, 56
      %v2132 = vpop.permute.xlu0 %2131
      %2133 = vrot.lane.b32.xlu0 %v1186, 56
      %v2134 = vpop.permute.xlu0 %2133
      %2135 = vrot.lane.b32.xlu0 %v1187, 56
      %v2136 = vpop.permute.xlu0 %2135
      %2137 = vrot.lane.b32.xlu0 %v1188, 56
      %v2138 = vpop.permute.xlu0 %2137
      %2139 = vrot.lane.b32.xlu0 %v1189, 56
      %v2140 = vpop.permute.xlu0 %2139
      %2141 = vrot.lane.b32.xlu0 %v1190, 56
      %v2142 = vpop.permute.xlu0 %2141
      %2143 = vrot.lane.b32.xlu0 %v1191, 56
      %v2144 = vpop.permute.xlu0 %2143
      %2145 = vrot.lane.b32.xlu0 %v1192, 56
      %v2146 = vpop.permute.xlu0 %2145
      %2147 = vrot.lane.b32.xlu0 %v1193, 56
      %v2148 = vpop.permute.xlu0 %2147
      %2149 = vrot.lane.b32.xlu0 %v1194, 56
      %v2150 = vpop.permute.xlu0 %2149
      %2151 = vrot.lane.b32.xlu0 %v1195, 56
      %v2152 = vpop.permute.xlu0 %2151
      %2153 = vrot.lane.b32.xlu0 %v1196, 56
      %v2154 = vpop.permute.xlu0 %2153
      %2155 = vrot.lane.b32.xlu0 %v1197, 56
      %v2156 = vpop.permute.xlu0 %2155
      %2157 = vrot.lane.b32.xlu0 %v1198, 56
      %v2158 = vpop.permute.xlu0 %2157
      %2159 = vrot.lane.b32.xlu0 %v1199, 56
      %v2160 = vpop.permute.xlu0 %2159
      %2161 = vrot.lane.b32.xlu0 %v1200, 56
      %v2162 = vpop.permute.xlu0 %2161
      %2163 = vrot.lane.b32.xlu0 %v1201, 56
      %v2164 = vpop.permute.xlu0 %2163
      %2165 = vrot.lane.b32.xlu0 %v1202, 56
      %v2166 = vpop.permute.xlu0 %2165
      %2167 = vrot.lane.b32.xlu0 %v1301, 56
      %v2168 = vpop.permute.xlu0 %2167
      %2169 = vrot.lane.b32.xlu0 %v1302, 56
      %v2170 = vpop.permute.xlu0 %2169
      %2235 = vrot.lane.b32.xlu0 %v1305, 64
      %v2236 = vpop.permute.xlu0 %2235
      %2237 = vrot.lane.b32.xlu0 %v1306, 64
      %v2238 = vpop.permute.xlu0 %2237
      %2239 = vrot.lane.b32.xlu0 %v1307, 64
      %v2240 = vpop.permute.xlu0 %2239
      %2241 = vrot.lane.b32.xlu0 %v1308, 64
      %v2242 = vpop.permute.xlu0 %2241
      %2243 = vrot.lane.b32.xlu0 %v1309, 64
      %v2244 = vpop.permute.xlu0 %2243
      %2245 = vrot.lane.b32.xlu0 %v1310, 64
      %v2246 = vpop.permute.xlu0 %2245
      %2247 = vrot.lane.b32.xlu0 %v1311, 64
      %v2248 = vpop.permute.xlu0 %2247
      %2249 = vrot.lane.b32.xlu0 %v1312, 64
      %v2250 = vpop.permute.xlu0 %2249
      %2251 = vrot.lane.b32.xlu0 %v1313, 64
      %v2252 = vpop.permute.xlu0 %2251
      %2253 = vrot.lane.b32.xlu0 %v1314, 64
      %v2254 = vpop.permute.xlu0 %2253
      %2255 = vrot.lane.b32.xlu0 %v1315, 64
      %v2256 = vpop.permute.xlu0 %2255
      %2257 = vrot.lane.b32.xlu0 %v1316, 64
      %v2258 = vpop.permute.xlu0 %2257
      %2259 = vrot.lane.b32.xlu0 %v1317, 64
      %v2260 = vpop.permute.xlu0 %2259
      %2261 = vrot.lane.b32.xlu0 %v1318, 64
      %v2262 = vpop.permute.xlu0 %2261
      %2263 = vrot.lane.b32.xlu0 %v1319, 64
      %v2264 = vpop.permute.xlu0 %2263
      %2265 = vrot.lane.b32.xlu0 %v1320, 64
      %v2266 = vpop.permute.xlu0 %2265
      %2267 = vrot.lane.b32.xlu0 %v1321, 64
      %v2268 = vpop.permute.xlu0 %2267
      %2269 = vrot.lane.b32.xlu0 %v1322, 64
      %v2270 = vpop.permute.xlu0 %2269
      %2271 = vrot.lane.b32.xlu0 %v1323, 64
      %v2272 = vpop.permute.xlu0 %2271
      %2273 = vrot.lane.b32.xlu0 %v1324, 64
      %v2274 = vpop.permute.xlu0 %2273
      %2275 = vrot.lane.b32.xlu0 %v1325, 64
      %v2276 = vpop.permute.xlu0 %2275
      %2277 = vrot.lane.b32.xlu0 %v1326, 64
      %v2278 = vpop.permute.xlu0 %2277
      %2279 = vrot.lane.b32.xlu0 %v1327, 64
      %v2280 = vpop.permute.xlu0 %2279
      %2281 = vrot.lane.b32.xlu0 %v1328, 64
      %v2282 = vpop.permute.xlu0 %2281
      %2283 = vrot.lane.b32.xlu0 %v1329, 64
      %v2284 = vpop.permute.xlu0 %2283
      %2285 = vrot.lane.b32.xlu0 %v1330, 64
      %v2286 = vpop.permute.xlu0 %2285
      %2287 = vrot.lane.b32.xlu0 %v1331, 64
      %v2288 = vpop.permute.xlu0 %2287
      %2289 = vrot.lane.b32.xlu0 %v1332, 64
      %v2290 = vpop.permute.xlu0 %2289
      %2291 = vrot.lane.b32.xlu0 %v1333, 64
      %v2292 = vpop.permute.xlu0 %2291
      %2293 = vrot.lane.b32.xlu0 %v1334, 64
      %v2294 = vpop.permute.xlu0 %2293
      %2295 = vrot.lane.b32.xlu0 %v1335, 64
      %v2296 = vpop.permute.xlu0 %2295
      %2297 = vrot.lane.b32.xlu0 %v1336, 64
      %v2298 = vpop.permute.xlu0 %2297
      %v2331 = vsel %vm556, %v851, %v1370
      %v2332 = vsel %vm556, %v852, %v1372
      %v2333 = vsel %vm556, %v853, %v1374
      %v2334 = vsel %vm556, %v854, %v1376
      %v2335 = vsel %vm556, %v855, %v1378
      %v2336 = vsel %vm556, %v856, %v1380
      %v2337 = vsel %vm556, %v857, %v1382
      %v2338 = vsel %vm556, %v858, %v1384
      %v2339 = vsel %vm556, %v859, %v1386
      %v2340 = vsel %vm556, %v860, %v1388
      %v2341 = vsel %vm556, %v861, %v1390
      %v2342 = vsel %vm556, %v862, %v1392
      %v2343 = vsel %vm556, %v863, %v1394
      %v2344 = vsel %vm556, %v864, %v1396
      %v2345 = vsel %vm556, %v865, %v1398
      %v2346 = vsel %vm556, %v866, %v1400
      %v2347 = vsel %vm556, %v867, %v1402
      %v2348 = vsel %vm556, %v868, %v1404
      %v2349 = vsel %vm556, %v869, %v1406
      %v2350 = vsel %vm556, %v870, %v1408
      %v2351 = vsel %vm556, %v871, %v1410
      %v2352 = vsel %vm556, %v872, %v1412
      %v2353 = vsel %vm556, %v873, %v1414
      %v2354 = vsel %vm556, %v874, %v1416
      %v2355 = vsel %vm556, %v875, %v1418
      %v2356 = vsel %vm556, %v876, %v1420
      %v2357 = vsel %vm556, %v877, %v1422
      %v2358 = vsel %vm556, %v878, %v1424
      %v2359 = vsel %vm556, %v879, %v1426
      %v2360 = vsel %vm556, %v880, %v1428
      %v2361 = vsel %vm556, %v881, %v1430
      %v2362 = vsel %vm556, %v882, %v1432
      %vm2363 = vcmask 130048
      %v2364 = vsel %vm2363, %v2331, %v1498
      %v2365 = vsel %vm2363, %v2332, %v1500
      %v2366 = vsel %vm2363, %v2333, %v1502
      %v2367 = vsel %vm2363, %v2334, %v1504
      %v2368 = vsel %vm2363, %v2335, %v1506
      %v2369 = vsel %vm2363, %v2336, %v1508
      %v2370 = vsel %vm2363, %v2337, %v1510
      %v2371 = vsel %vm2363, %v2338, %v1512
      %v2372 = vsel %vm2363, %v2339, %v1514
      %v2373 = vsel %vm2363, %v2340, %v1516
      %v2374 = vsel %vm2363, %v2341, %v1518
      %v2375 = vsel %vm2363, %v2342, %v1520
      %v2376 = vsel %vm2363, %v2343, %v1522
      %v2377 = vsel %vm2363, %v2344, %v1524
      %v2378 = vsel %vm2363, %v2345, %v1526
      %v2379 = vsel %vm2363, %v2346, %v1528
      %v2380 = vsel %vm2363, %v2347, %v1530
      %v2381 = vsel %vm2363, %v2348, %v1532
      %v2382 = vsel %vm2363, %v2349, %v1534
      %v2383 = vsel %vm2363, %v2350, %v1536
      %v2384 = vsel %vm2363, %v2351, %v1538
      %v2385 = vsel %vm2363, %v2352, %v1540
      %v2386 = vsel %vm2363, %v2353, %v1542
      %v2387 = vsel %vm2363, %v2354, %v1544
      %v2388 = vsel %vm2363, %v2355, %v1546
      %v2389 = vsel %vm2363, %v2356, %v1548
      %v2390 = vsel %vm2363, %v2357, %v1550
      %v2391 = vsel %vm2363, %v2358, %v1552
      %v2392 = vsel %vm2363, %v2359, %v1554
      %v2393 = vsel %vm2363, %v2360, %v1556
      %v2394 = vsel %vm2363, %v2361, %v1558
      %v2395 = vsel %vm2363, %v2362, %v1560
      %vm2396 = vcmask 195584
      %v2397 = vsel %vm2396, %v2364, %v1626
      %v2398 = vsel %vm2396, %v2365, %v1628
      %v2399 = vsel %vm2396, %v2366, %v1630
      %v2400 = vsel %vm2396, %v2367, %v1632
      %v2401 = vsel %vm2396, %v2368, %v1634
      %v2402 = vsel %vm2396, %v2369, %v1636
      %v2403 = vsel %vm2396, %v2370, %v1638
      %v2404 = vsel %vm2396, %v2371, %v1640
      %v2405 = vsel %vm2396, %v2372, %v1642
      %v2406 = vsel %vm2396, %v2373, %v1644
      %v2407 = vsel %vm2396, %v2374, %v1646
      %v2408 = vsel %vm2396, %v2375, %v1648
      %v2409 = vsel %vm2396, %v2376, %v1650
      %v2410 = vsel %vm2396, %v2377, %v1652
      %v2411 = vsel %vm2396, %v2378, %v1654
      %v2412 = vsel %vm2396, %v2379, %v1656
      %v2413 = vsel %vm2396, %v2380, %v1658
      %v2414 = vsel %vm2396, %v2381, %v1660
      %v2415 = vsel %vm2396, %v2382, %v1662
      %v2416 = vsel %vm2396, %v2383, %v1664
      %v2417 = vsel %vm2396, %v2384, %v1666
      %v2418 = vsel %vm2396, %v2385, %v1668
      %v2419 = vsel %vm2396, %v2386, %v1670
      %v2420 = vsel %vm2396, %v2387, %v1672
      %v2421 = vsel %vm2396, %v2388, %v1674
      %v2422 = vsel %vm2396, %v2389, %v1676
      %v2423 = vsel %vm2396, %v2390, %v1678
      %v2424 = vsel %vm2396, %v2391, %v1680
      %v2425 = vsel %vm2396, %v2392, %v1682
      %v2426 = vsel %vm2396, %v2393, %v1684
      %v2427 = vsel %vm2396, %v2394, %v1686
      %v2428 = vsel %vm2396, %v2395, %v1688
      %v2429 = vsel %vm234, %v2397, %v1754
      %v2430 = vsel %vm234, %v2398, %v1756
      %v2431 = vsel %vm234, %v2399, %v1758
      %v2432 = vsel %vm234, %v2400, %v1760
      %v2433 = vsel %vm234, %v2401, %v1762
      %v2434 = vsel %vm234, %v2402, %v1764
      %v2435 = vsel %vm234, %v2403, %v1766
      %v2436 = vsel %vm234, %v2404, %v1768
      %v2437 = vsel %vm234, %v2405, %v1770
      %v2438 = vsel %vm234, %v2406, %v1772
      %v2439 = vsel %vm234, %v2407, %v1774
      %v2440 = vsel %vm234, %v2408, %v1776
      %v2441 = vsel %vm234, %v2409, %v1778
      %v2442 = vsel %vm234, %v2410, %v1780
      %v2443 = vsel %vm234, %v2411, %v1782
      %v2444 = vsel %vm234, %v2412, %v1784
      %v2445 = vsel %vm234, %v2413, %v1786
      %v2446 = vsel %vm234, %v2414, %v1788
      %v2447 = vsel %vm234, %v2415, %v1790
      %v2448 = vsel %vm234, %v2416, %v1792
      %v2449 = vsel %vm234, %v2417, %v1794
      %v2450 = vsel %vm234, %v2418, %v1796
      %v2451 = vsel %vm234, %v2419, %v1798
      %v2452 = vsel %vm234, %v2420, %v1800
      %v2453 = vsel %vm234, %v2421, %v1802
      %v2454 = vsel %vm234, %v2422, %v1804
      %v2455 = vsel %vm234, %v2423, %v1806
      %v2456 = vsel %vm234, %v2424, %v1808
      %v2457 = vsel %vm234, %v2425, %v1810
      %v2458 = vsel %vm234, %v2426, %v1812
      %v2459 = vsel %vm234, %v2427, %v1814
      %v2460 = vsel %vm234, %v2428, %v1816
      %vm2461 = vcmask 326656
      %v2462 = vsel %vm2461, %v2429, %v1882
      %v2463 = vsel %vm2461, %v2430, %v1884
      %v2464 = vsel %vm2461, %v2431, %v1886
      %v2465 = vsel %vm2461, %v2432, %v1888
      %v2466 = vsel %vm2461, %v2433, %v1890
      %v2467 = vsel %vm2461, %v2434, %v1892
      %v2468 = vsel %vm2461, %v2435, %v1894
      %v2469 = vsel %vm2461, %v2436, %v1896
      %v2470 = vsel %vm2461, %v2437, %v1898
      %v2471 = vsel %vm2461, %v2438, %v1900
      %v2472 = vsel %vm2461, %v2439, %v1902
      %v2473 = vsel %vm2461, %v2440, %v1904
      %v2474 = vsel %vm2461, %v2441, %v1906
      %v2475 = vsel %vm2461, %v2442, %v1908
      %v2476 = vsel %vm2461, %v2443, %v1910
      %v2477 = vsel %vm2461, %v2444, %v1912
      %v2478 = vsel %vm2461, %v2445, %v1914
      %v2479 = vsel %vm2461, %v2446, %v1916
      %v2480 = vsel %vm2461, %v2447, %v1918
      %v2481 = vsel %vm2461, %v2448, %v1920
      %v2482 = vsel %vm2461, %v2449, %v1922
      %v2483 = vsel %vm2461, %v2450, %v1924
      %v2484 = vsel %vm2461, %v2451, %v1926
      %v2485 = vsel %vm2461, %v2452, %v1928
      %v2486 = vsel %vm2461, %v2453, %v1930
      %v2487 = vsel %vm2461, %v2454, %v1932
      %v2488 = vsel %vm2461, %v2455, %v1934
      %v2489 = vsel %vm2461, %v2456, %v1936
      %v2490 = vsel %vm2461, %v2457, %v1938
      %v2491 = vsel %vm2461, %v2458, %v1940
      %v2492 = vsel %vm2461, %v2459, %v1942
      %v2493 = vsel %vm2461, %v2460, %v1944
      %vm2494 = vcmask 392192
      %v2495 = vsel %vm2494, %v2462, %v2010
      %v2496 = vsel %vm2494, %v2463, %v2012
      %v2497 = vsel %vm2494, %v2464, %v2014
      %v2498 = vsel %vm2494, %v2465, %v2016
      %v2499 = vsel %vm2494, %v2466, %v2018
      %v2500 = vsel %vm2494, %v2467, %v2020
      %v2501 = vsel %vm2494, %v2468, %v2022
      %v2502 = vsel %vm2494, %v2469, %v2024
      %v2503 = vsel %vm2494, %v2470, %v2026
      %v2504 = vsel %vm2494, %v2471, %v2028
      %v2505 = vsel %vm2494, %v2472, %v2030
      %v2506 = vsel %vm2494, %v2473, %v2032
      %v2507 = vsel %vm2494, %v2474, %v2034
      %v2508 = vsel %vm2494, %v2475, %v2036
      %v2509 = vsel %vm2494, %v2476, %v2038
      %v2510 = vsel %vm2494, %v2477, %v2040
      %v2511 = vsel %vm2494, %v2478, %v2042
      %v2512 = vsel %vm2494, %v2479, %v2044
      %v2513 = vsel %vm2494, %v2480, %v2046
      %v2514 = vsel %vm2494, %v2481, %v2048
      %v2515 = vsel %vm2494, %v2482, %v2050
      %v2516 = vsel %vm2494, %v2483, %v2052
      %v2517 = vsel %vm2494, %v2484, %v2054
      %v2518 = vsel %vm2494, %v2485, %v2056
      %v2519 = vsel %vm2494, %v2486, %v2058
      %v2520 = vsel %vm2494, %v2487, %v2060
      %v2521 = vsel %vm2494, %v2488, %v2062
      %v2522 = vsel %vm2494, %v2489, %v2064
      %v2523 = vsel %vm2494, %v2490, %v2066
      %v2524 = vsel %vm2494, %v2491, %v2068
      %v2525 = vsel %vm2494, %v2492, %v2070
      %v2526 = vsel %vm2494, %v2493, %v2072
      %vm2527 = vcmask 457728
      %v2528 = vsel %vm2527, %v2495, %v2108
      %v2529 = vsel %vm2527, %v2496, %v2110
      %v2530 = vsel %vm2527, %v2497, %v2112
      %v2531 = vsel %vm2527, %v2498, %v2114
      %v2532 = vsel %vm2527, %v2499, %v2116
      %v2533 = vsel %vm2527, %v2500, %v2118
      %v2534 = vsel %vm2527, %v2501, %v2120
      %v2535 = vsel %vm2527, %v2502, %v2122
      %v2536 = vsel %vm2527, %v2503, %v2124
      %v2537 = vsel %vm2527, %v2504, %v2126
      %v2538 = vsel %vm2527, %v2505, %v2128
      %v2539 = vsel %vm2527, %v2506, %v2130
      %v2540 = vsel %vm2527, %v2507, %v2132
      %v2541 = vsel %vm2527, %v2508, %v2134
      %v2542 = vsel %vm2527, %v2509, %v2136
      %v2543 = vsel %vm2527, %v2510, %v2138
      %v2544 = vsel %vm2527, %v2511, %v2140
      %v2545 = vsel %vm2527, %v2512, %v2142
      %v2546 = vsel %vm2527, %v2513, %v2144
      %v2547 = vsel %vm2527, %v2514, %v2146
      %v2548 = vsel %vm2527, %v2515, %v2148
      %v2549 = vsel %vm2527, %v2516, %v2150
      %v2550 = vsel %vm2527, %v2517, %v2152
      %v2551 = vsel %vm2527, %v2518, %v2154
      %v2552 = vsel %vm2527, %v2519, %v2156
      %v2553 = vsel %vm2527, %v2520, %v2158
      %v2554 = vsel %vm2527, %v2521, %v2160
      %v2555 = vsel %vm2527, %v2522, %v2162
      %v2556 = vsel %vm2527, %v2523, %v2164
      %v2557 = vsel %vm2527, %v2524, %v2166
      %v2558 = vsel %vm2527, %v2525, %v2168
      %v2559 = vsel %vm2527, %v2526, %v2170
      %vm2560 = vcmask 523264
      %v2561 = vsel %vm2560, %v2528, %v2236
      %v2562 = vsel %vm2560, %v2529, %v2238
      %v2563 = vsel %vm2560, %v2530, %v2240
      %v2564 = vsel %vm2560, %v2531, %v2242
      %v2565 = vsel %vm2560, %v2532, %v2244
      %v2566 = vsel %vm2560, %v2533, %v2246
      %v2567 = vsel %vm2560, %v2534, %v2248
      %v2568 = vsel %vm2560, %v2535, %v2250
      %v2569 = vsel %vm2560, %v2536, %v2252
      %v2570 = vsel %vm2560, %v2537, %v2254
      %v2571 = vsel %vm2560, %v2538, %v2256
      %v2572 = vsel %vm2560, %v2539, %v2258
      %v2573 = vsel %vm2560, %v2540, %v2260
      %v2574 = vsel %vm2560, %v2541, %v2262
      %v2575 = vsel %vm2560, %v2542, %v2264
      %v2576 = vsel %vm2560, %v2543, %v2266
      %v2577 = vsel %vm2560, %v2544, %v2268
      %v2578 = vsel %vm2560, %v2545, %v2270
      %v2579 = vsel %vm2560, %v2546, %v2272
      %v2580 = vsel %vm2560, %v2547, %v2274
      %v2581 = vsel %vm2560, %v2548, %v2276
      %v2582 = vsel %vm2560, %v2549, %v2278
      %v2583 = vsel %vm2560, %v2550, %v2280
      %v2584 = vsel %vm2560, %v2551, %v2282
      %v2585 = vsel %vm2560, %v2552, %v2284
      %v2586 = vsel %vm2560, %v2553, %v2286
      %v2587 = vsel %vm2560, %v2554, %v2288
      %v2588 = vsel %vm2560, %v2555, %v2290
      %v2589 = vsel %vm2560, %v2556, %v2292
      %v2590 = vsel %vm2560, %v2557, %v2294
      %v2591 = vsel %vm2560, %v2558, %v2296
      %v2592 = vsel %vm2560, %v2559, %v2298
      %v2593 = vld [vmem:[%s2] sm:$0xff]
      %v2594 = vld [vmem:[%s2 + $0x8] sm:$0xff]
      %v2595 = vld [vmem:[%s2 + $0x10] sm:$0xff]
      %v2596 = vld [vmem:[%s2 + $0x18] sm:$0xff]
      %v2597 = vld [vmem:[%s2 + $0x20] sm:$0xff]
      %v2598 = vld [vmem:[%s2 + $0x28] sm:$0xff]
      %v2599 = vld [vmem:[%s2 + $0x30] sm:$0xff]
      %v2600 = vld [vmem:[%s2 + $0x38] sm:$0xff]
      %v2601 = vld [vmem:[%s2 + $0x40] sm:$0xff]
      %vm2602 = vcmask 588800
      %v2604 = vsel %vm2602, %v2561, 0
      %v2607 = vsel %vm2602, %v2562, 0
      %v2610 = vsel %vm2602, %v2563, 0
      %v2613 = vsel %vm2602, %v2564, 0
      %v2616 = vsel %vm2602, %v2565, 0
      %v2619 = vsel %vm2602, %v2566, 0
      %v2622 = vsel %vm2602, %v2567, 0
      %v2625 = vsel %vm2602, %v2568, 0
      %v2628 = vsel %vm2602, %v2569, 0
      %v2631 = vsel %vm2602, %v2570, 0
      %v2634 = vsel %vm2602, %v2571, 0
      %v2637 = vsel %vm2602, %v2572, 0
      %v2640 = vsel %vm2602, %v2573, 0
      %v2643 = vsel %vm2602, %v2574, 0
      %v2646 = vsel %vm2602, %v2575, 0
      %v2649 = vsel %vm2602, %v2576, 0
      %v2652 = vsel %vm2602, %v2577, 0
      %v2655 = vsel %vm2602, %v2578, 0
      %v2658 = vsel %vm2602, %v2579, 0
      %v2661 = vsel %vm2602, %v2580, 0
      %v2664 = vsel %vm2602, %v2581, 0
      %v2667 = vsel %vm2602, %v2582, 0
      %v2670 = vsel %vm2602, %v2583, 0
      %v2673 = vsel %vm2602, %v2584, 0
      %v2676 = vsel %vm2602, %v2585, 0
      %v2679 = vsel %vm2602, %v2586, 0
      %v2682 = vsel %vm2602, %v2587, 0
      %v2685 = vsel %vm2602, %v2588, 0
      %v2688 = vsel %vm2602, %v2589, 0
      %v2691 = vsel %vm2602, %v2590, 0
      %v2694 = vsel %vm2602, %v2591, 0
      %v2697 = vsel %vm2602, %v2592, 0
      %2699 = vmatprep.subr.mxu0 0.0
      %2700 = vmatpush1.msra.mxu0 0.0
      %2701 = vmatprep.subr.mxu0 0.0
      %2702 = vmatpush1.msra.mxu0 0.0
      %2703 = vmatprep.subr.mxu0 0.0
      %2704 = vmatpush1.msra.mxu0 0.0
      %2705 = vmatprep.subr.mxu0 0.0
      %2706 = vmatpush1.msra.mxu0 0.0
      %2707 = vmatprep.subr.mxu0 0.0
      %2708 = vmatpush1.msra.mxu0 0.0
      %2709 = vmatprep.subr.mxu0 0.0
      %2710 = vmatpush1.msra.mxu0 0.0
      %2711 = vmatprep.subr.mxu0 0.0
      %2712 = vmatpush1.msra.mxu0 0.0
      %2713 = vmatprep.subr.mxu0 0.0
      %2714 = vmatpush1.msra.mxu0 %v2601
      %2715 = vmatprep.subr.mxu0 0.0
      %2716 = vmatpush1.msra.mxu0 %v2600
      %2717 = vmatprep.subr.mxu0 0.0
      %2718 = vmatpush1.msra.mxu0 %v2599
      %2719 = vmatprep.subr.mxu0 0.0
      %2720 = vmatpush1.msra.mxu0 %v2598
      %2721 = vmatprep.subr.mxu0 0.0
      %2722 = vmatpush1.msra.mxu0 %v2597
      %2723 = vmatprep.subr.mxu0 0.0
      %2724 = vmatpush1.msra.mxu0 %v2596
      %2725 = vmatprep.subr.mxu0 0.0
      %2726 = vmatpush1.msra.mxu0 %v2595
      %2727 = vmatprep.subr.mxu0 0.0
      %2728 = vmatpush1.msra.mxu0 %v2594
      %2729 = vmatprep.subr.mxu0 0.0
      %2730 = vmatpush1.msra.mxu0 %v2593
      %2731 = vmatprep.subr.mxu0 0.0
      %2732 = vmatpush2.msra.mxu0 0.0
      %2733 = vmatprep.subr.mxu0 0.0
      %2734 = vmatpush2.msra.mxu0 0.0
      %2735 = vmatprep.subr.mxu0 0.0
      %2736 = vmatpush2.msra.mxu0 0.0
      %2737 = vmatprep.subr.mxu0 0.0
      %2738 = vmatpush2.msra.mxu0 0.0
      %2739 = vmatprep.subr.mxu0 0.0
      %2740 = vmatpush2.msra.mxu0 0.0
      %2741 = vmatprep.subr.mxu0 0.0
      %2742 = vmatpush2.msra.mxu0 0.0
      %2743 = vmatprep.subr.mxu0 0.0
      %2744 = vmatpush2.msra.mxu0 0.0
      %2745 = vmatprep.subr.mxu0 0.0
      %2746 = vmatpush2.msra.mxu0 0.0
      %2747 = vmatprep.subr.mxu0 0.0
      %2748 = vmatpush2.msra.mxu0 0.0
      %2749 = vmatprep.subr.mxu0 0.0
      %2750 = vmatpush2.msra.mxu0 0.0
      %2751 = vmatprep.subr.mxu0 0.0
      %2752 = vmatpush2.msra.mxu0 0.0
      %2753 = vmatprep.subr.mxu0 0.0
      %2754 = vmatpush2.msra.mxu0 0.0
      %2755 = vmatprep.subr.mxu0 0.0
      %2756 = vmatpush2.msra.mxu0 0.0
      %2757 = vmatprep.subr.mxu0 0.0
      %2758 = vmatpush2.msra.mxu0 0.0
      %2759 = vmatprep.subr.mxu0 0.0
      %2760 = vmatpush2.msra.mxu0 0.0
      %2761 = vmatprep.subr.mxu0 0.0
      %2762 = vmatpush2.msra.mxu0 0.0
      %2763 = vmatprep.mubr.f32.mxu0 0.0
      %2764 = vmatmul.mubr.f32.gmra.mxu0 %v2604
      %v2765 = vpop.f32.mrf.mxu0
      %v2766 = vadd.f32 0.0, %v2765
      %v2767 = vpop.f32.mrf.mxu0
      %2768 = vmatprep.mubr.f32.mxu0 0.0
      %2769 = vmatmul.mubr.f32.gmra.mxu0 %v2607
      %v2770 = vpop.f32.mrf.mxu0
      %v2771 = vadd.f32 0.0, %v2770
      %v2772 = vpop.f32.mrf.mxu0
      %2773 = vmatprep.mubr.f32.mxu0 0.0
      %2774 = vmatmul.mubr.f32.gmra.mxu0 %v2610
      %v2775 = vpop.f32.mrf.mxu0
      %v2776 = vadd.f32 0.0, %v2775
      %v2777 = vpop.f32.mrf.mxu0
      %2778 = vmatprep.mubr.f32.mxu0 0.0
      %2779 = vmatmul.mubr.f32.gmra.mxu0 %v2613
      %v2780 = vpop.f32.mrf.mxu0
      %v2781 = vadd.f32 0.0, %v2780
      %v2782 = vpop.f32.mrf.mxu0
      %2783 = vmatprep.mubr.f32.mxu0 0.0
      %2784 = vmatmul.mubr.f32.gmra.mxu0 %v2616
      %v2785 = vpop.f32.mrf.mxu0
      %v2786 = vadd.f32 0.0, %v2785
      %v2787 = vpop.f32.mrf.mxu0
      %2788 = vmatprep.mubr.f32.mxu0 0.0
      %2789 = vmatmul.mubr.f32.gmra.mxu0 %v2619
      %v2790 = vpop.f32.mrf.mxu0
      %v2791 = vadd.f32 0.0, %v2790
      %v2792 = vpop.f32.mrf.mxu0
      %2793 = vmatprep.mubr.f32.mxu0 0.0
      %2794 = vmatmul.mubr.f32.gmra.mxu0 %v2622
      %v2795 = vpop.f32.mrf.mxu0
      %v2796 = vadd.f32 0.0, %v2795
      %v2797 = vpop.f32.mrf.mxu0
      %2798 = vmatprep.mubr.f32.mxu0 0.0
      %2799 = vmatmul.mubr.f32.gmra.mxu0 %v2625
      %v2800 = vpop.f32.mrf.mxu0
      %v2801 = vadd.f32 0.0, %v2800
      %v2802 = vpop.f32.mrf.mxu0
      %2803 = vmatprep.mubr.f32.mxu0 0.0
      %2804 = vmatmul.mubr.f32.gmra.mxu0 %v2628
      %v2805 = vpop.f32.mrf.mxu0
      %v2806 = vadd.f32 0.0, %v2805
      %v2807 = vpop.f32.mrf.mxu0
      %2808 = vmatprep.mubr.f32.mxu0 0.0
      %2809 = vmatmul.mubr.f32.gmra.mxu0 %v2631
      %v2810 = vpop.f32.mrf.mxu0
      %v2811 = vadd.f32 0.0, %v2810
      %v2812 = vpop.f32.mrf.mxu0
      %2813 = vmatprep.mubr.f32.mxu0 0.0
      %2814 = vmatmul.mubr.f32.gmra.mxu0 %v2634
      %v2815 = vpop.f32.mrf.mxu0
      %v2816 = vadd.f32 0.0, %v2815
      %v2817 = vpop.f32.mrf.mxu0
      %2818 = vmatprep.mubr.f32.mxu0 0.0
      %2819 = vmatmul.mubr.f32.gmra.mxu0 %v2637
      %v2820 = vpop.f32.mrf.mxu0
      %v2821 = vadd.f32 0.0, %v2820
      %v2822 = vpop.f32.mrf.mxu0
      %2823 = vmatprep.mubr.f32.mxu0 0.0
      %2824 = vmatmul.mubr.f32.gmra.mxu0 %v2640
      %v2825 = vpop.f32.mrf.mxu0
      %v2826 = vadd.f32 0.0, %v2825
      %v2827 = vpop.f32.mrf.mxu0
      %2828 = vmatprep.mubr.f32.mxu0 0.0
      %2829 = vmatmul.mubr.f32.gmra.mxu0 %v2643
      %v2830 = vpop.f32.mrf.mxu0
      %v2831 = vadd.f32 0.0, %v2830
      %v2832 = vpop.f32.mrf.mxu0
      %2833 = vmatprep.mubr.f32.mxu0 0.0
      %2834 = vmatmul.mubr.f32.gmra.mxu0 %v2646
      %v2835 = vpop.f32.mrf.mxu0
      %v2836 = vadd.f32 0.0, %v2835
      %v2837 = vpop.f32.mrf.mxu0
      %2838 = vmatprep.mubr.f32.mxu0 0.0
      %2839 = vmatmul.mubr.f32.gmra.mxu0 %v2649
      %v2840 = vpop.f32.mrf.mxu0
      %v2841 = vadd.f32 0.0, %v2840
      %v2842 = vpop.f32.mrf.mxu0
      %2843 = vmatprep.mubr.f32.mxu0 0.0
      %2844 = vmatmul.mubr.f32.gmra.mxu0 %v2652
      %v2845 = vpop.f32.mrf.mxu0
      %v2846 = vadd.f32 0.0, %v2845
      %v2847 = vpop.f32.mrf.mxu0
      %2848 = vmatprep.mubr.f32.mxu0 0.0
      %2849 = vmatmul.mubr.f32.gmra.mxu0 %v2655
      %v2850 = vpop.f32.mrf.mxu0
      %v2851 = vadd.f32 0.0, %v2850
      %v2852 = vpop.f32.mrf.mxu0
      %2853 = vmatprep.mubr.f32.mxu0 0.0
      %2854 = vmatmul.mubr.f32.gmra.mxu0 %v2658
      %v2855 = vpop.f32.mrf.mxu0
      %v2856 = vadd.f32 0.0, %v2855
      %v2857 = vpop.f32.mrf.mxu0
      %2858 = vmatprep.mubr.f32.mxu0 0.0
      %2859 = vmatmul.mubr.f32.gmra.mxu0 %v2661
      %v2860 = vpop.f32.mrf.mxu0
      %v2861 = vadd.f32 0.0, %v2860
      %v2862 = vpop.f32.mrf.mxu0
      %2863 = vmatprep.mubr.f32.mxu0 0.0
      %2864 = vmatmul.mubr.f32.gmra.mxu0 %v2664
      %v2865 = vpop.f32.mrf.mxu0
      %v2866 = vadd.f32 0.0, %v2865
      %v2867 = vpop.f32.mrf.mxu0
      %2868 = vmatprep.mubr.f32.mxu0 0.0
      %2869 = vmatmul.mubr.f32.gmra.mxu0 %v2667
      %v2870 = vpop.f32.mrf.mxu0
      %v2871 = vadd.f32 0.0, %v2870
      %v2872 = vpop.f32.mrf.mxu0
      %2873 = vmatprep.mubr.f32.mxu0 0.0
      %2874 = vmatmul.mubr.f32.gmra.mxu0 %v2670
      %v2875 = vpop.f32.mrf.mxu0
      %v2876 = vadd.f32 0.0, %v2875
      %v2877 = vpop.f32.mrf.mxu0
      %2878 = vmatprep.mubr.f32.mxu0 0.0
      %2879 = vmatmul.mubr.f32.gmra.mxu0 %v2673
      %v2880 = vpop.f32.mrf.mxu0
      %v2881 = vadd.f32 0.0, %v2880
      %v2882 = vpop.f32.mrf.mxu0
      %2883 = vmatprep.mubr.f32.mxu0 0.0
      %2884 = vmatmul.mubr.f32.gmra.mxu0 %v2676
      %v2885 = vpop.f32.mrf.mxu0
      %v2886 = vadd.f32 0.0, %v2885
      %v2887 = vpop.f32.mrf.mxu0
      %2888 = vmatprep.mubr.f32.mxu0 0.0
      %2889 = vmatmul.mubr.f32.gmra.mxu0 %v2679
      %v2890 = vpop.f32.mrf.mxu0
      %v2891 = vadd.f32 0.0, %v2890
      %v2892 = vpop.f32.mrf.mxu0
      %2893 = vmatprep.mubr.f32.mxu0 0.0
      %2894 = vmatmul.mubr.f32.gmra.mxu0 %v2682
      %v2895 = vpop.f32.mrf.mxu0
      %v2896 = vadd.f32 0.0, %v2895
      %v2897 = vpop.f32.mrf.mxu0
      %2898 = vmatprep.mubr.f32.mxu0 0.0
      %2899 = vmatmul.mubr.f32.gmra.mxu0 %v2685
      %v2900 = vpop.f32.mrf.mxu0
      %v2901 = vadd.f32 0.0, %v2900
      %v2902 = vpop.f32.mrf.mxu0
      %2903 = vmatprep.mubr.f32.mxu0 0.0
      %2904 = vmatmul.mubr.f32.gmra.mxu0 %v2688
      %v2905 = vpop.f32.mrf.mxu0
      %v2906 = vadd.f32 0.0, %v2905
      %v2907 = vpop.f32.mrf.mxu0
      %2908 = vmatprep.mubr.f32.mxu0 0.0
      %2909 = vmatmul.mubr.f32.gmra.mxu0 %v2691
      %v2910 = vpop.f32.mrf.mxu0
      %v2911 = vadd.f32 0.0, %v2910
      %v2912 = vpop.f32.mrf.mxu0
      %2913 = vmatprep.mubr.f32.mxu0 0.0
      %2914 = vmatmul.mubr.f32.gmra.mxu0 %v2694
      %v2915 = vpop.f32.mrf.mxu0
      %v2916 = vadd.f32 0.0, %v2915
      %v2917 = vpop.f32.mrf.mxu0
      %2918 = vmatprep.mubr.f32.mxu0 0.0
      %2919 = vmatmul.mubr.f32.gmra.mxu0 %v2697
      %v2920 = vpop.f32.mrf.mxu0
      %v2921 = vadd.f32 0.0, %v2920
      %v2922 = vpop.f32.mrf.mxu0
      %2923 = vdwg.mxu0
      %v2924 = vmax.f32 %v2766, 0.0
      %v2925 = vmax.f32 %v2771, 0.0
      %v2926 = vmax.f32 %v2776, 0.0
      %v2927 = vmax.f32 %v2781, 0.0
      %v2928 = vmax.f32 %v2786, 0.0
      %v2929 = vmax.f32 %v2791, 0.0
      %v2930 = vmax.f32 %v2796, 0.0
      %v2931 = vmax.f32 %v2801, 0.0
      %v2932 = vmax.f32 %v2806, 0.0
      %v2933 = vmax.f32 %v2811, 0.0
      %v2934 = vmax.f32 %v2816, 0.0
      %v2935 = vmax.f32 %v2821, 0.0
      %v2936 = vmax.f32 %v2826, 0.0
      %v2937 = vmax.f32 %v2831, 0.0
      %v2938 = vmax.f32 %v2836, 0.0
      %v2939 = vmax.f32 %v2841, 0.0
      %v2940 = vmax.f32 %v2846, 0.0
      %v2941 = vmax.f32 %v2851, 0.0
      %v2942 = vmax.f32 %v2856, 0.0
      %v2943 = vmax.f32 %v2861, 0.0
      %v2944 = vmax.f32 %v2866, 0.0
      %v2945 = vmax.f32 %v2871, 0.0
      %v2946 = vmax.f32 %v2876, 0.0
      %v2947 = vmax.f32 %v2881, 0.0
      %v2948 = vmax.f32 %v2886, 0.0
      %v2949 = vmax.f32 %v2891, 0.0
      %v2950 = vmax.f32 %v2896, 0.0
      %v2951 = vmax.f32 %v2901, 0.0
      %v2952 = vmax.f32 %v2906, 0.0
      %v2953 = vmax.f32 %v2911, 0.0
      %v2954 = vmax.f32 %v2916, 0.0
      %v2955 = vmax.f32 %v2921, 0.0
      %2956 = vrot.lane.b32.xlu0 %v198, 32
      %v2957 = vpop.permute.xlu0 %2956
      %2958 = vrot.lane.b32.xlu0 %v199, 32
      %v2959 = vpop.permute.xlu0 %2958
      %2960 = vrot.lane.b32.xlu0 %v200, 32
      %v2961 = vpop.permute.xlu0 %2960
      %2962 = vrot.lane.b32.xlu0 %v201, 32
      %v2963 = vpop.permute.xlu0 %2962
      %2964 = vrot.lane.b32.xlu0 %v202, 32
      %v2965 = vpop.permute.xlu0 %2964
      %2966 = vrot.lane.b32.xlu0 %v203, 32
      %v2967 = vpop.permute.xlu0 %2966
      %2968 = vrot.lane.b32.xlu0 %v204, 32
      %v2969 = vpop.permute.xlu0 %2968
      %2970 = vrot.lane.b32.xlu0 %v205, 32
      %v2971 = vpop.permute.xlu0 %2970
      %2972 = vrot.lane.b32.xlu0 %v206, 32
      %v2973 = vpop.permute.xlu0 %2972
      %2974 = vrot.lane.b32.xlu0 %v207, 32
      %v2975 = vpop.permute.xlu0 %2974
      %2976 = vrot.lane.b32.xlu0 %v208, 32
      %v2977 = vpop.permute.xlu0 %2976
      %2978 = vrot.lane.b32.xlu0 %v209, 32
      %v2979 = vpop.permute.xlu0 %2978
      %2980 = vrot.lane.b32.xlu0 %v210, 32
      %v2981 = vpop.permute.xlu0 %2980
      %2982 = vrot.lane.b32.xlu0 %v211, 32
      %v2983 = vpop.permute.xlu0 %2982
      %2984 = vrot.lane.b32.xlu0 %v212, 32
      %v2985 = vpop.permute.xlu0 %2984
      %2986 = vrot.lane.b32.xlu0 %v213, 32
      %v2987 = vpop.permute.xlu0 %2986
      %2988 = vrot.lane.b32.xlu0 %v214, 32
      %v2989 = vpop.permute.xlu0 %2988
      %2990 = vrot.lane.b32.xlu0 %v215, 32
      %v2991 = vpop.permute.xlu0 %2990
      %2992 = vrot.lane.b32.xlu0 %v216, 32
      %v2993 = vpop.permute.xlu0 %2992
      %2994 = vrot.lane.b32.xlu0 %v217, 32
      %v2995 = vpop.permute.xlu0 %2994
      %2996 = vrot.lane.b32.xlu0 %v218, 32
      %v2997 = vpop.permute.xlu0 %2996
      %2998 = vrot.lane.b32.xlu0 %v219, 32
      %v2999 = vpop.permute.xlu0 %2998
      %3000 = vrot.lane.b32.xlu0 %v220, 32
      %v3001 = vpop.permute.xlu0 %3000
      %3002 = vrot.lane.b32.xlu0 %v221, 32
      %v3003 = vpop.permute.xlu0 %3002
      %3004 = vrot.lane.b32.xlu0 %v222, 32
      %v3005 = vpop.permute.xlu0 %3004
      %3006 = vrot.lane.b32.xlu0 %v223, 32
      %v3007 = vpop.permute.xlu0 %3006
      %3008 = vrot.lane.b32.xlu0 %v224, 32
      %v3009 = vpop.permute.xlu0 %3008
      %3010 = vrot.lane.b32.xlu0 %v225, 32
      %v3011 = vpop.permute.xlu0 %3010
      %3012 = vrot.lane.b32.xlu0 %v226, 32
      %v3013 = vpop.permute.xlu0 %3012
      %3014 = vrot.lane.b32.xlu0 %v227, 32
      %v3015 = vpop.permute.xlu0 %3014
      %3016 = vrot.lane.b32.xlu0 %v228, 32
      %v3017 = vpop.permute.xlu0 %3016
      %3018 = vrot.lane.b32.xlu0 %v229, 32
      %v3019 = vpop.permute.xlu0 %3018
      %v3052 = vsel %vm234, %v2924, %v2957
      %v3053 = vsel %vm234, %v2925, %v2959
      %v3054 = vsel %vm234, %v2926, %v2961
      %v3055 = vsel %vm234, %v2927, %v2963
      %v3056 = vsel %vm234, %v2928, %v2965
      %v3057 = vsel %vm234, %v2929, %v2967
      %v3058 = vsel %vm234, %v2930, %v2969
      %v3059 = vsel %vm234, %v2931, %v2971
      %v3060 = vsel %vm234, %v2932, %v2973
      %v3061 = vsel %vm234, %v2933, %v2975
      %v3062 = vsel %vm234, %v2934, %v2977
      %v3063 = vsel %vm234, %v2935, %v2979
      %v3064 = vsel %vm234, %v2936, %v2981
      %v3065 = vsel %vm234, %v2937, %v2983
      %v3066 = vsel %vm234, %v2938, %v2985
      %v3067 = vsel %vm234, %v2939, %v2987
      %v3068 = vsel %vm234, %v2940, %v2989
      %v3069 = vsel %vm234, %v2941, %v2991
      %v3070 = vsel %vm234, %v2942, %v2993
      %v3071 = vsel %vm234, %v2943, %v2995
      %v3072 = vsel %vm234, %v2944, %v2997
      %v3073 = vsel %vm234, %v2945, %v2999
      %v3074 = vsel %vm234, %v2946, %v3001
      %v3075 = vsel %vm234, %v2947, %v3003
      %v3076 = vsel %vm234, %v2948, %v3005
      %v3077 = vsel %vm234, %v2949, %v3007
      %v3078 = vsel %vm234, %v2950, %v3009
      %v3079 = vsel %vm234, %v2951, %v3011
      %v3080 = vsel %vm234, %v2952, %v3013
      %v3081 = vsel %vm234, %v2953, %v3015
      %v3082 = vsel %vm234, %v2954, %v3017
      %v3083 = vsel %vm234, %v2955, %v3019
      %3084 = vst.msk [vmem:[%s197] sm:$0xff] %vm2560, %v3052
      %3085 = vst.msk [vmem:[%s197 + $0x8] sm:$0xff] %vm2560, %v3053
      %3086 = vst.msk [vmem:[%s197 + $0x10] sm:$0xff] %vm2560, %v3054
      %3087 = vst.msk [vmem:[%s197 + $0x18] sm:$0xff] %vm2560, %v3055
      %3088 = vst.msk [vmem:[%s197 + $0x20] sm:$0xff] %vm2560, %v3056
      %3089 = vst.msk [vmem:[%s197 + $0x28] sm:$0xff] %vm2560, %v3057
      %3090 = vst.msk [vmem:[%s197 + $0x30] sm:$0xff] %vm2560, %v3058
      %3091 = vst.msk [vmem:[%s197 + $0x38] sm:$0xff] %vm2560, %v3059
      %3092 = vst.msk [vmem:[%s197 + $0x40] sm:$0xff] %vm2560, %v3060
      %3093 = vst.msk [vmem:[%s197 + $0x48] sm:$0xff] %vm2560, %v3061
      %3094 = vst.msk [vmem:[%s197 + $0x50] sm:$0xff] %vm2560, %v3062
      %3095 = vst.msk [vmem:[%s197 + $0x58] sm:$0xff] %vm2560, %v3063
      %3096 = vst.msk [vmem:[%s197 + $0x60] sm:$0xff] %vm2560, %v3064
      %3097 = vst.msk [vmem:[%s197 + $0x68] sm:$0xff] %vm2560, %v3065
      %3098 = vst.msk [vmem:[%s197 + $0x70] sm:$0xff] %vm2560, %v3066
      %3099 = vst.msk [vmem:[%s197 + $0x78] sm:$0xff] %vm2560, %v3067
      %3100 = vst.msk [vmem:[%s197 + $0x80] sm:$0xff] %vm2560, %v3068
      %3101 = vst.msk [vmem:[%s197 + $0x88] sm:$0xff] %vm2560, %v3069
      %3102 = vst.msk [vmem:[%s197 + $0x90] sm:$0xff] %vm2560, %v3070
      %3103 = vst.msk [vmem:[%s197 + $0x98] sm:$0xff] %vm2560, %v3071
      %3104 = vst.msk [vmem:[%s197 + $0xa0] sm:$0xff] %vm2560, %v3072
      %3105 = vst.msk [vmem:[%s197 + $0xa8] sm:$0xff] %vm2560, %v3073
      %3106 = vst.msk [vmem:[%s197 + $0xb0] sm:$0xff] %vm2560, %v3074
      %3107 = vst.msk [vmem:[%s197 + $0xb8] sm:$0xff] %vm2560, %v3075
      %3108 = vst.msk [vmem:[%s197 + $0xc0] sm:$0xff] %vm2560, %v3076
      %3109 = vst.msk [vmem:[%s197 + $0xc8] sm:$0xff] %vm2560, %v3077
      %3110 = vst.msk [vmem:[%s197 + $0xd0] sm:$0xff] %vm2560, %v3078
      %3111 = vst.msk [vmem:[%s197 + $0xd8] sm:$0xff] %vm2560, %v3079
      %3112 = vst.msk [vmem:[%s197 + $0xe0] sm:$0xff] %vm2560, %v3080
      %3113 = vst.msk [vmem:[%s197 + $0xe8] sm:$0xff] %vm2560, %v3081
      %3114 = vst.msk [vmem:[%s197 + $0xf0] sm:$0xff] %vm2560, %v3082
      %3115 = vst.msk [vmem:[%s197 + $0xf8] sm:$0xff] %vm2560, %v3083
      %p3116 = scmp.lt.s32.totalorder %s15, 1
      %s3117 = scalar_select %p3116, %s15, 1
      %s3118 = smul.addr %s3117, 32
      %s3119 = smul.addr %s3118, 8
      %s3120 = scalar_lea.vmem %s4, %s3119
      // Predicated region
      $region37: #{tpu_custom_call.1} parent=35 // pred_check
        %p3121 = pneg %p122
      $region38: #{tpu_custom_call.1} parent=35 // pred_check_branch
        %3123 = sbr.rel (%p3121) target = $region40
      $region39: #{tpu_custom_call.1} parent=35 // pred_region
        _
      $region40: #{tpu_custom_call.1} parent=35 // pred_fallthru
        _
    $region36: #{tpu_custom_call.1} parent=5 // pred_fallthru
      _
    %p3124 = scmp.le.s32.totalorder 2, %s10
    // Predicated region
    $region41: #{tpu_custom_call.1} parent=5 // pred_check
      %p3125 = pneg %p3124
    $region42: #{tpu_custom_call.1} parent=5 // pred_check_branch
      %3127 = sbr.rel (%p3125) target = $region44
    $region43: #{tpu_custom_call.1} parent=5 // pred_region
      %s3128 = ssub.s32 %s10, 2
      // Predicated region
      $region45: #{tpu_custom_call.1} parent=43 // pred_check
        %p3129 = pneg %p128
      $region46: #{tpu_custom_call.1} parent=43 // pred_check_branch
        %3131 = sbr.rel (%p3129) target = $region48
      $region47: #{tpu_custom_call.1} parent=43 // pred_region
        %p3132 = scmp.lt.s32.totalorder %s16, 1
        %s3133 = scalar_select %p3132, %s16, 1
        %s3134 = smul.addr %s3133, 32
        %s3135 = smul.addr %s3134, 8
        %s3136 = scalar_lea.vmem %s4, %s3135
      $region48: #{tpu_custom_call.1} parent=43 // pred_fallthru
        _
    $region44: #{tpu_custom_call.1} parent=5 // pred_fallthru
      _
  $region6: #{tpu_custom_call.1} parent=0 // loop_footer
    %s14 = sadd.s32 1, %s10
  $region7: #{tpu_custom_call.1} parent=0 // loop_footer_branch
    %9 = sbr.rel target = $region3
  $region8: #{tpu_custom_call.1} parent=0 // loop_exit
    _

</llo_original>
